<compile_context>
chip_gen: v7x
topology: tpu7x:2x2x1
jax: 0.10.0
libtpu: 0.0.40
codegen_flags: <defaults>
</compile_context>

<pallas_src>
import functools

import jax
import jax.numpy as jnp
from jax.experimental import pallas as pl
from jax.experimental.pallas import tpu as pltpu


# ----------------------------- shift helpers --------------------------------
def _band_masks(shape, axis, pad):
    """Validity masks for zero-filled +/-d shifts along `axis` (hoisted once)."""
    n = shape[axis]
    idx = jax.lax.broadcasted_iota(jnp.int32, shape, axis)
    return [(idx >= d, idx < n - d) for d in range(1, pad + 1)]


def _band_sum_roll(a, axis, masks):
    """sum_{d=-pad..pad} zero-filled shift(a, d) via pltpu.roll + mask."""
    n = a.shape[axis]
    out = a
    for d, (m_pos, m_neg) in enumerate(masks, start=1):
        if d >= n:
            continue  # fully shifted out -> contributes nothing
        plus = pltpu.roll(a, shift=d, axis=axis)            # out[i] = a[i - d]
        minus = pltpu.roll(a, shift=(n - d) % n, axis=axis)  # out[i] = a[i + d]
        out = out + jnp.where(m_pos, plus, 0.0) + jnp.where(m_neg, minus, 0.0)
    return out


def _shifted_concat(a, d, axis):
    """Zero-filled shift via static slice + concat (portable fallback)."""
    n = a.shape[axis]
    pad_shape = list(a.shape)
    pad_shape[axis] = abs(d)
    zeros = jnp.zeros(pad_shape, a.dtype)
    if d > 0:                                   # out[i] = a[i - d]
        body = jax.lax.slice_in_dim(a, 0, n - d, axis=axis)
        return jnp.concatenate([zeros, body], axis=axis)
    body = jax.lax.slice_in_dim(a, -d, n, axis=axis)   # out[i] = a[i + |d|]
    return jnp.concatenate([body, zeros], axis=axis)


def _band_sum_concat(a, axis, pad):
    out = a
    for d in range(1, pad + 1):
        if d >= a.shape[axis]:
            continue
        out = out + _shifted_concat(a, d, axis) + _shifted_concat(a, -d, axis)
    return out


# -------------------------------- kernel ------------------------------------
def _dssim_kernel(pred_ref, true_ref, out_ref, *, kernel_size, c1, c2,
                  approx_recip, n_batch_total, use_roll):
    # pred_ref / true_ref: (bt, 3, H, W) VMEM blocks; out_ref: (1, 8, 128).
    pad = (kernel_size - 1) // 2
    bt, _, h, w = pred_ref.shape
    n = float(3 * kernel_size * kernel_size)      # values per patch (27 for k=3)

    if use_roll:
        masks_w = _band_masks((bt, h, w), 2, pad)
        masks_h = _band_masks((bt, h, w), 1, pad)

    def box(a):                                   # separable k x k box sum
        if use_roll:
            a = _band_sum_roll(a, 2, masks_w)     # along W (lanes)
            a = _band_sum_roll(a, 1, masks_h)     # along H (sublanes)
        else:
            a = _band_sum_concat(a, 2, pad)
            a = _band_sum_concat(a, 1, pad)
        return a

    # Per-channel accumulation: never materializes the full (bt,3,H,W) blocks
    # in f32; only the five (bt,H,W) f32 accumulators plus two channel
    # temporaries are live at once.
    sum_t = sum_p = sum_tt = sum_pp = sum_tp = None
    for ci in range(3):
        t_c = true_ref[:, ci, :, :].astype(jnp.float32)    # (bt, H, W)
        p_c = pred_ref[:, ci, :, :].astype(jnp.float32)
        if ci == 0:
            sum_t, sum_p = t_c, p_c
            sum_tt, sum_pp, sum_tp = t_c * t_c, p_c * p_c, t_c * p_c
        else:
            sum_t = sum_t + t_c
            sum_p = sum_p + p_c
            sum_tt = sum_tt + t_c * t_c
            sum_pp = sum_pp + p_c * p_c
            sum_tp = sum_tp + t_c * p_c

    s_t, s_p = box(sum_t), box(sum_p)
    s_tt, s_pp, s_tp = box(sum_tt), box(sum_pp), box(sum_tp)

    inv_n = 1.0 / n
    inv_nm1 = 1.0 / (n - 1.0)
    u_t = s_t * inv_n
    u_p = s_p * inv_n
    # torch.var default is unbiased (correction = 1)
    var_t = (s_tt - n * u_t * u_t) * inv_nm1
    var_p = (s_pp - n * u_p * u_p) * inv_nm1
    # covariance term in the reference uses the biased mean
    covar = s_tp * inv_n - u_t * u_p

    num = (2.0 * u_t * u_p + c1) * (2.0 * covar + c2)
    den = (u_t * u_t + u_p * u_p + c1) * (var_p + var_t + c2)
    dssim = (1.0 - num * pl.reciprocal(den, approx=approx_recip)) * 0.5

    # Ragged batch: mask rows past the true batch size (select -> garbage in
    # the partially-DMA'd last block cannot poison the sum).  Static no-op
    # when the batch divides evenly.
    if n_batch_total % bt != 0:
        remaining = n_batch_total - pl.program_id(0) * bt
        b_idx = jax.lax.broadcasted_iota(jnp.int32, dssim.shape, 0)
        dssim = jnp.where(b_idx < remaining, dssim, 0.0)

    # Reduce batch + sublanes first (element-wise VPU adds); only the final
    # single-row lane reduction hits the XLU.  The broadcast keeps the store
    # one full unmasked (8, 128) vreg; the wrapper reads [:, 0, 0].
    partial = jnp.sum(jnp.sum(dssim, axis=(0, 1)))
    out_ref[...] = jnp.broadcast_to(partial, out_ref.shape).astype(jnp.float32)


# ------------------------------- wrapper -------------------------------------
def _vmem_budget_bytes():
    """Generation-aware VMEM budget: 75% of per-core capacity."""
    try:
        cap = int(pltpu.get_tpu_info().vmem_capacity_bytes)
    except Exception:
        cap = 64 * 1024 * 1024        # conservative (v7x per-TC) fallback
    return (cap * 3) // 4             # ~48 MiB on v7x, ~96 MiB on v5e/v6e


def dssim_loss(y_pred, y_true, *, k_1=0.01, k_2=0.03, kernel_size=3,
               max_value=1.0, batch_block=None, approx_recip=True):
    """Pallas TPU implementation of DSSIMLoss.forward (returns a scalar)."""
    if y_pred.shape != y_true.shape:
        raise ValueError("y_pred / y_true shape mismatch")
    n_batch, n_chan, h, w = y_pred.shape
    if n_chan < 3:
        raise ValueError("DSSIMLoss needs at least 3 channels")
    c1 = float((k_1 * max_value) ** 2)
    c2 = float((k_2 * max_value) ** 2)

    # ---- batch block size from the VMEM budget ------------------------------
    in_itemsize = jnp.dtype(y_pred.dtype).itemsize
    # per batch element: 2 tensors x 2 pipeline buffers of the (3,H,W) input
    # block + ~10 live (H,W) f32 intermediates (accumulators + channel temps).
    per_elem = 2 * 2 * 3 * h * w * in_itemsize + 10 * h * w * 4
    budget = _vmem_budget_bytes()
    bt = int(max(1, min(n_batch, budget // max(per_elem, 1))))
    if batch_block is not None:
        bt = max(1, min(bt, int(batch_block)))
    # Keep >= 2 grid blocks whenever possible so v7x's 2 TensorCores both work
    # (one extra ~0.35 us grid step elsewhere is noise).
    if bt >= n_batch and n_batch > 1:
        bt = (n_batch + 1) // 2
    num_blocks = -(-n_batch // bt)

    # Channel block of size 3 at block index 0 selects channels 0..2 straight
    # out of HBM (no wrapper-side slice/cast copy).  No jnp.pad of the batch:
    # the ragged last block is masked inside the kernel.
    in_spec = pl.BlockSpec((bt, 3, h, w), lambda nb: (nb, 0, 0, 0))
    out_spec = pl.BlockSpec((1, 8, 128), lambda nb: (nb, 0, 0))

    def run(use_roll):
        kernel = functools.partial(
            _dssim_kernel, kernel_size=kernel_size, c1=c1, c2=c2,
            approx_recip=approx_recip, n_batch_total=n_batch, use_roll=use_roll)
        return pl.pallas_call(
            kernel,
            out_shape=jax.ShapeDtypeStruct((num_blocks, 8, 128), jnp.float32),
            grid=(num_blocks,),
            in_specs=[in_spec, in_spec],
            out_specs=out_spec,
            compiler_params=pltpu.CompilerParams(
                dimension_semantics=("parallel",),   # independent batch blocks
                vmem_limit_bytes=int(budget)),
        )(y_pred, y_true)

    # Prefer the roll-based shifts (no materialized temporaries); fall back to
    # the concat-based shifts if this Mosaic version rejects the rotate path
    # (fallback only triggers when called eagerly, i.e. outside jit).
    try:
        partials = run(use_roll=True)
    except Exception:
        partials = run(use_roll=False)

    total = jnp.sum(partials[:, 0, 0])
    return total / jnp.float32(n_batch * h * w)


# ------------------------------ reference ------------------------------------
def _dssim_reference(y_pred, y_true, *, k_1=0.01, k_2=0.03, kernel_size=3,
                     max_value=1.0):
    """Plain-JAX reference of DSSIMLoss.forward (self-check only)."""
    c1 = (k_1 * max_value) ** 2
    c2 = (k_2 * max_value) ** 2
    k = kernel_size
    pad = (k - 1) // 2
    p = y_pred[:, :3].astype(jnp.float32)
    t = y_true[:, :3].astype(jnp.float32)
    n = 3 * k * k
    _, _, h, w = p.shape

    def box(a):                                   # zero-padded k x k box sum
        ap = jnp.pad(a, ((0, 0), (pad, pad), (pad, pad)))
        out = jnp.zeros_like(a)
        for di in range(k):
            for dj in range(k):
                out = out + ap[:, di:di + h, dj:dj + w]
        return out

    s_t, s_p = box(t.sum(1)), box(p.sum(1))
    s_tt, s_pp = box((t * t).sum(1)), box((p * p).sum(1))
    s_tp = box((t * p).sum(1))
    u_t, u_p = s_t / n, s_p / n
    var_t = (s_tt - n * u_t * u_t) / (n - 1)
    var_p = (s_pp - n * u_p * u_p) / (n - 1)
    covar = s_tp / n - u_t * u_p
    ssim = ((2 * u_t * u_p + c1) * (2 * covar + c2)
            / ((u_t * u_t + u_p * u_p + c1) * (var_p + var_t + c2)))
    return jnp.mean((1.0 - ssim) * 0.5)


if __name__ == "__main__":
    key = jax.random.PRNGKey(0)
    kp, kt = jax.random.split(key)
    # NCHW with 4 channels: only the first 3 are used, like extract_patches.
    y_pred = jax.random.uniform(kp, (4, 4, 16, 16), dtype=jnp.float32)
    y_true = jax.random.uniform(kt, (4, 4, 16, 16), dtype=jnp.float32)

    ref = _dssim_reference(y_pred, y_true)

    # Called eagerly (no jax.jit) so the roll->concat portability fallback can
    # act at compile time.  batch_block=2 -> 2 parallel grid blocks, which
    # exercises the multi-block / megacore path.
    loss_exact = dssim_loss(y_pred, y_true, batch_block=2, approx_recip=False)
    jax.block_until_ready(loss_exact)
    assert jnp.allclose(loss_exact, ref, rtol=1e-4, atol=1e-6), (loss_exact, ref)

    # Default configuration: EUP approximate reciprocal (looser tolerance).
    loss = dssim_loss(y_pred, y_true, batch_block=2)
    jax.block_until_ready(loss)
    assert jnp.allclose(loss, ref, rtol=5e-3, atol=1e-3), (loss, ref)

    print("KERNEL_OK")
</pallas_src>

<mosaic_0001>
module attributes {stable_mosaic.version = 11 : i64} {
  func.func @_dssim_kernel(%arg0: i32, %arg1: memref<2x3x16x16xf32, #tpu.memory_space<vmem>>, %arg2: memref<2x3x16x16xf32, #tpu.memory_space<vmem>>, %arg3: memref<1x8x128xf32, #tpu.memory_space<vmem>>) attributes {dimension_semantics = [#tpu.dimension_semantics<parallel>], iteration_bounds = array<i64: 2>, scalar_prefetch = 0 : i64, scratch_operands = 0 : i64, tpu.core_type = #tpu.core_type<tc>, window_params = [{transform_indices = @transform_0, window_bounds = array<i64: 2, 3, 16, 16>}, {transform_indices = @transform_1, window_bounds = array<i64: 2, 3, 16, 16>}, {transform_indices = @transform_2, window_bounds = array<i64: 1, 8, 128>}]} {
    %0 = tpu.iota {dimensions = array<i32: 2>} : vector<2x16x16xi32>
    %c1_i32 = arith.constant 1 : i32
    %1 = vector.broadcast %c1_i32 : i32 to vector<2x16x16xi32>
    %2 = arith.cmpi sge, %0, %1 : vector<2x16x16xi32>
    %c15_i32 = arith.constant 15 : i32
    %3 = vector.broadcast %c15_i32 : i32 to vector<2x16x16xi32>
    %4 = arith.cmpi slt, %0, %3 : vector<2x16x16xi32>
    %5 = tpu.iota {dimensions = array<i32: 1>} : vector<2x16x16xi32>
    %c1_i32_0 = arith.constant 1 : i32
    %6 = vector.broadcast %c1_i32_0 : i32 to vector<2x16x16xi32>
    %7 = arith.cmpi sge, %5, %6 : vector<2x16x16xi32>
    %c15_i32_1 = arith.constant 15 : i32
    %8 = vector.broadcast %c15_i32_1 : i32 to vector<2x16x16xi32>
    %9 = arith.cmpi slt, %5, %8 : vector<2x16x16xi32>
    %c0 = arith.constant 0 : index
    %c0_2 = arith.constant 0 : index
    %c0_3 = arith.constant 0 : index
    %c0_4 = arith.constant 0 : index
    %10 = vector.load %arg2[%c0, %c0_2, %c0_3, %c0_4] : memref<2x3x16x16xf32, #tpu.memory_space<vmem>>, vector<2x1x16x16xf32>
    %11 = vector.shape_cast %10 : vector<2x1x16x16xf32> to vector<2x16x16xf32>
    %c0_5 = arith.constant 0 : index
    %c0_6 = arith.constant 0 : index
    %c0_7 = arith.constant 0 : index
    %c0_8 = arith.constant 0 : index
    %12 = vector.load %arg1[%c0_5, %c0_6, %c0_7, %c0_8] : memref<2x3x16x16xf32, #tpu.memory_space<vmem>>, vector<2x1x16x16xf32>
    %13 = vector.shape_cast %12 : vector<2x1x16x16xf32> to vector<2x16x16xf32>
    %14 = arith.mulf %11, %11 : vector<2x16x16xf32>
    %15 = arith.mulf %13, %13 : vector<2x16x16xf32>
    %16 = arith.mulf %11, %13 : vector<2x16x16xf32>
    %c0_9 = arith.constant 0 : index
    %c1 = arith.constant 1 : index
    %c0_10 = arith.constant 0 : index
    %c0_11 = arith.constant 0 : index
    %17 = vector.load %arg2[%c0_9, %c1, %c0_10, %c0_11] : memref<2x3x16x16xf32, #tpu.memory_space<vmem>>, vector<2x1x16x16xf32>
    %18 = vector.shape_cast %17 : vector<2x1x16x16xf32> to vector<2x16x16xf32>
    %c0_12 = arith.constant 0 : index
    %c1_13 = arith.constant 1 : index
    %c0_14 = arith.constant 0 : index
    %c0_15 = arith.constant 0 : index
    %19 = vector.load %arg1[%c0_12, %c1_13, %c0_14, %c0_15] : memref<2x3x16x16xf32, #tpu.memory_space<vmem>>, vector<2x1x16x16xf32>
    %20 = vector.shape_cast %19 : vector<2x1x16x16xf32> to vector<2x16x16xf32>
    %21 = arith.addf %11, %18 : vector<2x16x16xf32>
    %22 = arith.addf %13, %20 : vector<2x16x16xf32>
    %23 = arith.mulf %18, %18 : vector<2x16x16xf32>
    %24 = arith.addf %14, %23 : vector<2x16x16xf32>
    %25 = arith.mulf %20, %20 : vector<2x16x16xf32>
    %26 = arith.addf %15, %25 : vector<2x16x16xf32>
    %27 = arith.mulf %18, %20 : vector<2x16x16xf32>
    %28 = arith.addf %16, %27 : vector<2x16x16xf32>
    %c0_16 = arith.constant 0 : index
    %c2 = arith.constant 2 : index
    %c0_17 = arith.constant 0 : index
    %c0_18 = arith.constant 0 : index
    %29 = vector.load %arg2[%c0_16, %c2, %c0_17, %c0_18] : memref<2x3x16x16xf32, #tpu.memory_space<vmem>>, vector<2x1x16x16xf32>
    %30 = vector.shape_cast %29 : vector<2x1x16x16xf32> to vector<2x16x16xf32>
    %c0_19 = arith.constant 0 : index
    %c2_20 = arith.constant 2 : index
    %c0_21 = arith.constant 0 : index
    %c0_22 = arith.constant 0 : index
    %31 = vector.load %arg1[%c0_19, %c2_20, %c0_21, %c0_22] : memref<2x3x16x16xf32, #tpu.memory_space<vmem>>, vector<2x1x16x16xf32>
    %32 = vector.shape_cast %31 : vector<2x1x16x16xf32> to vector<2x16x16xf32>
    %33 = arith.addf %21, %30 : vector<2x16x16xf32>
    %34 = arith.addf %22, %32 : vector<2x16x16xf32>
    %35 = arith.mulf %30, %30 : vector<2x16x16xf32>
    %36 = arith.addf %24, %35 : vector<2x16x16xf32>
    %37 = arith.mulf %32, %32 : vector<2x16x16xf32>
    %38 = arith.addf %26, %37 : vector<2x16x16xf32>
    %39 = arith.mulf %30, %32 : vector<2x16x16xf32>
    %40 = arith.addf %28, %39 : vector<2x16x16xf32>
    %c1_i32_23 = arith.constant 1 : i32
    %41 = tpu.dynamic_rotate %33 by %c1_i32_23 dim 2 : vector<2x16x16xf32>, i32 -> vector<2x16x16xf32>
    %c15_i32_24 = arith.constant 15 : i32
    %42 = tpu.dynamic_rotate %33 by %c15_i32_24 dim 2 : vector<2x16x16xf32>, i32 -> vector<2x16x16xf32>
    %cst = arith.constant 0.000000e+00 : f32
    %43 = vector.broadcast %cst : f32 to vector<2x16x16xf32>
    %44 = arith.select %2, %41, %43 : vector<2x16x16xi1>, vector<2x16x16xf32>
    %45 = arith.addf %33, %44 : vector<2x16x16xf32>
    %cst_25 = arith.constant 0.000000e+00 : f32
    %46 = vector.broadcast %cst_25 : f32 to vector<2x16x16xf32>
    %47 = arith.select %4, %42, %46 : vector<2x16x16xi1>, vector<2x16x16xf32>
    %48 = arith.addf %45, %47 : vector<2x16x16xf32>
    %c1_i32_26 = arith.constant 1 : i32
    %49 = tpu.dynamic_rotate %48 by %c1_i32_26 dim 1 : vector<2x16x16xf32>, i32 -> vector<2x16x16xf32>
    %c15_i32_27 = arith.constant 15 : i32
    %50 = tpu.dynamic_rotate %48 by %c15_i32_27 dim 1 : vector<2x16x16xf32>, i32 -> vector<2x16x16xf32>
    %cst_28 = arith.constant 0.000000e+00 : f32
    %51 = vector.broadcast %cst_28 : f32 to vector<2x16x16xf32>
    %52 = arith.select %7, %49, %51 : vector<2x16x16xi1>, vector<2x16x16xf32>
    %53 = arith.addf %48, %52 : vector<2x16x16xf32>
    %cst_29 = arith.constant 0.000000e+00 : f32
    %54 = vector.broadcast %cst_29 : f32 to vector<2x16x16xf32>
    %55 = arith.select %9, %50, %54 : vector<2x16x16xi1>, vector<2x16x16xf32>
    %56 = arith.addf %53, %55 : vector<2x16x16xf32>
    %c1_i32_30 = arith.constant 1 : i32
    %57 = tpu.dynamic_rotate %34 by %c1_i32_30 dim 2 : vector<2x16x16xf32>, i32 -> vector<2x16x16xf32>
    %c15_i32_31 = arith.constant 15 : i32
    %58 = tpu.dynamic_rotate %34 by %c15_i32_31 dim 2 : vector<2x16x16xf32>, i32 -> vector<2x16x16xf32>
    %cst_32 = arith.constant 0.000000e+00 : f32
    %59 = vector.broadcast %cst_32 : f32 to vector<2x16x16xf32>
    %60 = arith.select %2, %57, %59 : vector<2x16x16xi1>, vector<2x16x16xf32>
    %61 = arith.addf %34, %60 : vector<2x16x16xf32>
    %cst_33 = arith.constant 0.000000e+00 : f32
    %62 = vector.broadcast %cst_33 : f32 to vector<2x16x16xf32>
    %63 = arith.select %4, %58, %62 : vector<2x16x16xi1>, vector<2x16x16xf32>
    %64 = arith.addf %61, %63 : vector<2x16x16xf32>
    %c1_i32_34 = arith.constant 1 : i32
    %65 = tpu.dynamic_rotate %64 by %c1_i32_34 dim 1 : vector<2x16x16xf32>, i32 -> vector<2x16x16xf32>
    %c15_i32_35 = arith.constant 15 : i32
    %66 = tpu.dynamic_rotate %64 by %c15_i32_35 dim 1 : vector<2x16x16xf32>, i32 -> vector<2x16x16xf32>
    %cst_36 = arith.constant 0.000000e+00 : f32
    %67 = vector.broadcast %cst_36 : f32 to vector<2x16x16xf32>
    %68 = arith.select %7, %65, %67 : vector<2x16x16xi1>, vector<2x16x16xf32>
    %69 = arith.addf %64, %68 : vector<2x16x16xf32>
    %cst_37 = arith.constant 0.000000e+00 : f32
    %70 = vector.broadcast %cst_37 : f32 to vector<2x16x16xf32>
    %71 = arith.select %9, %66, %70 : vector<2x16x16xi1>, vector<2x16x16xf32>
    %72 = arith.addf %69, %71 : vector<2x16x16xf32>
    %c1_i32_38 = arith.constant 1 : i32
    %73 = tpu.dynamic_rotate %36 by %c1_i32_38 dim 2 : vector<2x16x16xf32>, i32 -> vector<2x16x16xf32>
    %c15_i32_39 = arith.constant 15 : i32
    %74 = tpu.dynamic_rotate %36 by %c15_i32_39 dim 2 : vector<2x16x16xf32>, i32 -> vector<2x16x16xf32>
    %cst_40 = arith.constant 0.000000e+00 : f32
    %75 = vector.broadcast %cst_40 : f32 to vector<2x16x16xf32>
    %76 = arith.select %2, %73, %75 : vector<2x16x16xi1>, vector<2x16x16xf32>
    %77 = arith.addf %36, %76 : vector<2x16x16xf32>
    %cst_41 = arith.constant 0.000000e+00 : f32
    %78 = vector.broadcast %cst_41 : f32 to vector<2x16x16xf32>
    %79 = arith.select %4, %74, %78 : vector<2x16x16xi1>, vector<2x16x16xf32>
    %80 = arith.addf %77, %79 : vector<2x16x16xf32>
    %c1_i32_42 = arith.constant 1 : i32
    %81 = tpu.dynamic_rotate %80 by %c1_i32_42 dim 1 : vector<2x16x16xf32>, i32 -> vector<2x16x16xf32>
    %c15_i32_43 = arith.constant 15 : i32
    %82 = tpu.dynamic_rotate %80 by %c15_i32_43 dim 1 : vector<2x16x16xf32>, i32 -> vector<2x16x16xf32>
    %cst_44 = arith.constant 0.000000e+00 : f32
    %83 = vector.broadcast %cst_44 : f32 to vector<2x16x16xf32>
    %84 = arith.select %7, %81, %83 : vector<2x16x16xi1>, vector<2x16x16xf32>
    %85 = arith.addf %80, %84 : vector<2x16x16xf32>
    %cst_45 = arith.constant 0.000000e+00 : f32
    %86 = vector.broadcast %cst_45 : f32 to vector<2x16x16xf32>
    %87 = arith.select %9, %82, %86 : vector<2x16x16xi1>, vector<2x16x16xf32>
    %88 = arith.addf %85, %87 : vector<2x16x16xf32>
    %c1_i32_46 = arith.constant 1 : i32
    %89 = tpu.dynamic_rotate %38 by %c1_i32_46 dim 2 : vector<2x16x16xf32>, i32 -> vector<2x16x16xf32>
    %c15_i32_47 = arith.constant 15 : i32
    %90 = tpu.dynamic_rotate %38 by %c15_i32_47 dim 2 : vector<2x16x16xf32>, i32 -> vector<2x16x16xf32>
    %cst_48 = arith.constant 0.000000e+00 : f32
    %91 = vector.broadcast %cst_48 : f32 to vector<2x16x16xf32>
    %92 = arith.select %2, %89, %91 : vector<2x16x16xi1>, vector<2x16x16xf32>
    %93 = arith.addf %38, %92 : vector<2x16x16xf32>
    %cst_49 = arith.constant 0.000000e+00 : f32
    %94 = vector.broadcast %cst_49 : f32 to vector<2x16x16xf32>
    %95 = arith.select %4, %90, %94 : vector<2x16x16xi1>, vector<2x16x16xf32>
    %96 = arith.addf %93, %95 : vector<2x16x16xf32>
    %c1_i32_50 = arith.constant 1 : i32
    %97 = tpu.dynamic_rotate %96 by %c1_i32_50 dim 1 : vector<2x16x16xf32>, i32 -> vector<2x16x16xf32>
    %c15_i32_51 = arith.constant 15 : i32
    %98 = tpu.dynamic_rotate %96 by %c15_i32_51 dim 1 : vector<2x16x16xf32>, i32 -> vector<2x16x16xf32>
    %cst_52 = arith.constant 0.000000e+00 : f32
    %99 = vector.broadcast %cst_52 : f32 to vector<2x16x16xf32>
    %100 = arith.select %7, %97, %99 : vector<2x16x16xi1>, vector<2x16x16xf32>
    %101 = arith.addf %96, %100 : vector<2x16x16xf32>
    %cst_53 = arith.constant 0.000000e+00 : f32
    %102 = vector.broadcast %cst_53 : f32 to vector<2x16x16xf32>
    %103 = arith.select %9, %98, %102 : vector<2x16x16xi1>, vector<2x16x16xf32>
    %104 = arith.addf %101, %103 : vector<2x16x16xf32>
    %c1_i32_54 = arith.constant 1 : i32
    %105 = tpu.dynamic_rotate %40 by %c1_i32_54 dim 2 : vector<2x16x16xf32>, i32 -> vector<2x16x16xf32>
    %c15_i32_55 = arith.constant 15 : i32
    %106 = tpu.dynamic_rotate %40 by %c15_i32_55 dim 2 : vector<2x16x16xf32>, i32 -> vector<2x16x16xf32>
    %cst_56 = arith.constant 0.000000e+00 : f32
    %107 = vector.broadcast %cst_56 : f32 to vector<2x16x16xf32>
    %108 = arith.select %2, %105, %107 : vector<2x16x16xi1>, vector<2x16x16xf32>
    %109 = arith.addf %40, %108 : vector<2x16x16xf32>
    %cst_57 = arith.constant 0.000000e+00 : f32
    %110 = vector.broadcast %cst_57 : f32 to vector<2x16x16xf32>
    %111 = arith.select %4, %106, %110 : vector<2x16x16xi1>, vector<2x16x16xf32>
    %112 = arith.addf %109, %111 : vector<2x16x16xf32>
    %c1_i32_58 = arith.constant 1 : i32
    %113 = tpu.dynamic_rotate %112 by %c1_i32_58 dim 1 : vector<2x16x16xf32>, i32 -> vector<2x16x16xf32>
    %c15_i32_59 = arith.constant 15 : i32
    %114 = tpu.dynamic_rotate %112 by %c15_i32_59 dim 1 : vector<2x16x16xf32>, i32 -> vector<2x16x16xf32>
    %cst_60 = arith.constant 0.000000e+00 : f32
    %115 = vector.broadcast %cst_60 : f32 to vector<2x16x16xf32>
    %116 = arith.select %7, %113, %115 : vector<2x16x16xi1>, vector<2x16x16xf32>
    %117 = arith.addf %112, %116 : vector<2x16x16xf32>
    %cst_61 = arith.constant 0.000000e+00 : f32
    %118 = vector.broadcast %cst_61 : f32 to vector<2x16x16xf32>
    %119 = arith.select %9, %114, %118 : vector<2x16x16xi1>, vector<2x16x16xf32>
    %120 = arith.addf %117, %119 : vector<2x16x16xf32>
    %cst_62 = arith.constant 0.0370370373 : f32
    %121 = vector.broadcast %cst_62 : f32 to vector<2x16x16xf32>
    %122 = arith.mulf %56, %121 : vector<2x16x16xf32>
    %cst_63 = arith.constant 0.0370370373 : f32
    %123 = vector.broadcast %cst_63 : f32 to vector<2x16x16xf32>
    %124 = arith.mulf %72, %123 : vector<2x16x16xf32>
    %cst_64 = arith.constant 2.700000e+01 : f32
    %125 = vector.broadcast %cst_64 : f32 to vector<2x16x16xf32>
    %126 = arith.mulf %125, %122 : vector<2x16x16xf32>
    %127 = arith.mulf %126, %122 : vector<2x16x16xf32>
    %128 = arith.subf %88, %127 : vector<2x16x16xf32>
    %cst_65 = arith.constant 0.0384615399 : f32
    %129 = vector.broadcast %cst_65 : f32 to vector<2x16x16xf32>
    %130 = arith.mulf %128, %129 : vector<2x16x16xf32>
    %cst_66 = arith.constant 2.700000e+01 : f32
    %131 = vector.broadcast %cst_66 : f32 to vector<2x16x16xf32>
    %132 = arith.mulf %131, %124 : vector<2x16x16xf32>
    %133 = arith.mulf %132, %124 : vector<2x16x16xf32>
    %134 = arith.subf %104, %133 : vector<2x16x16xf32>
    %cst_67 = arith.constant 0.0384615399 : f32
    %135 = vector.broadcast %cst_67 : f32 to vector<2x16x16xf32>
    %136 = arith.mulf %134, %135 : vector<2x16x16xf32>
    %cst_68 = arith.constant 0.0370370373 : f32
    %137 = vector.broadcast %cst_68 : f32 to vector<2x16x16xf32>
    %138 = arith.mulf %120, %137 : vector<2x16x16xf32>
    %139 = arith.mulf %122, %124 : vector<2x16x16xf32>
    %140 = arith.subf %138, %139 : vector<2x16x16xf32>
    %cst_69 = arith.constant 2.000000e+00 : f32
    %141 = vector.broadcast %cst_69 : f32 to vector<2x16x16xf32>
    %142 = arith.mulf %141, %122 : vector<2x16x16xf32>
    %143 = arith.mulf %142, %124 : vector<2x16x16xf32>
    %cst_70 = arith.constant 9.99999974E-5 : f32
    %144 = vector.broadcast %cst_70 : f32 to vector<2x16x16xf32>
    %145 = arith.addf %143, %144 : vector<2x16x16xf32>
    %cst_71 = arith.constant 2.000000e+00 : f32
    %146 = vector.broadcast %cst_71 : f32 to vector<2x16x16xf32>
    %147 = arith.mulf %146, %140 : vector<2x16x16xf32>
    %cst_72 = arith.constant 8.99999984E-4 : f32
    %148 = vector.broadcast %cst_72 : f32 to vector<2x16x16xf32>
    %149 = arith.addf %147, %148 : vector<2x16x16xf32>
    %150 = arith.mulf %145, %149 : vector<2x16x16xf32>
    %151 = arith.mulf %122, %122 : vector<2x16x16xf32>
    %152 = arith.mulf %124, %124 : vector<2x16x16xf32>
    %153 = arith.addf %151, %152 : vector<2x16x16xf32>
    %cst_73 = arith.constant 9.99999974E-5 : f32
    %154 = vector.broadcast %cst_73 : f32 to vector<2x16x16xf32>
    %155 = arith.addf %153, %154 : vector<2x16x16xf32>
    %156 = arith.addf %136, %130 : vector<2x16x16xf32>
    %cst_74 = arith.constant 8.99999984E-4 : f32
    %157 = vector.broadcast %cst_74 : f32 to vector<2x16x16xf32>
    %158 = arith.addf %156, %157 : vector<2x16x16xf32>
    %159 = arith.mulf %155, %158 : vector<2x16x16xf32>
    %160 = tpu.reciprocal %159 : vector<2x16x16xf32> -> vector<2x16x16xf32>
    %161 = arith.mulf %150, %160 : vector<2x16x16xf32>
    %cst_75 = arith.constant 1.000000e+00 : f32
    %162 = vector.broadcast %cst_75 : f32 to vector<2x16x16xf32>
    %163 = arith.subf %162, %161 : vector<2x16x16xf32>
    %cst_76 = arith.constant 5.000000e-01 : f32
    %164 = vector.broadcast %cst_76 : f32 to vector<2x16x16xf32>
    %165 = arith.mulf %163, %164 : vector<2x16x16xf32>
    %cst_77 = arith.constant dense<0.000000e+00> : vector<16xf32>
    %166 = vector.multi_reduction <add>, %165, %cst_77 [0, 1] : vector<2x16x16xf32> to vector<16xf32>
    %167 = vector.shape_cast %166 : vector<16xf32> to vector<1x16xf32>
    %cst_78 = arith.constant dense<0.000000e+00> : vector<1xf32>
    %168 = vector.multi_reduction <add>, %167, %cst_78 [1] : vector<1x16xf32> to vector<1xf32>
    %169 = vector.shape_cast %168 : vector<1xf32> to vector<1x1xf32>
    %170 = vector.extract %169[0, 0] : f32 from vector<1x1xf32>
    %171 = vector.broadcast %170 : f32 to vector<1x8x128xf32>
    %c0_79 = arith.constant 0 : index
    %c0_80 = arith.constant 0 : index
    %c0_81 = arith.constant 0 : index
    %172 = vector.load %arg3[%c0_79, %c0_80, %c0_81] : memref<1x8x128xf32, #tpu.memory_space<vmem>>, vector<1x8x128xf32>
    tpu.vector_store %arg3[%c0_79, %c0_80, %c0_81], %171 {strides = array<i32>} : memref<1x8x128xf32, #tpu.memory_space<vmem>>, vector<1x8x128xf32>,
    return
  }
  func.func @transform_0(%arg0: i32) -> (i32, i32, i32, i32) {
    %c0_i32 = arith.constant 0 : i32
    %c0_i32_0 = arith.constant 0 : i32
    %c0_i32_1 = arith.constant 0 : i32
    %c0_i32_2 = arith.constant 0 : i32
    return %arg0, %c0_i32, %c0_i32_0, %c0_i32_1 : i32, i32, i32, i32
  }
  func.func @transform_1(%arg0: i32) -> (i32, i32, i32, i32) {
    %c0_i32 = arith.constant 0 : i32
    %c0_i32_0 = arith.constant 0 : i32
    %c0_i32_1 = arith.constant 0 : i32
    %c0_i32_2 = arith.constant 0 : i32
    return %arg0, %c0_i32, %c0_i32_0, %c0_i32_1 : i32, i32, i32, i32
  }
  func.func @transform_2(%arg0: i32) -> (i32, i32, i32) {
    %c0_i32 = arith.constant 0 : i32
    %c0_i32_0 = arith.constant 0 : i32
    %c0_i32_1 = arith.constant 0 : i32
    return %arg0, %c0_i32, %c0_i32_0 : i32, i32, i32
  }
}

module attributes {stable_mosaic.version = 11 : i64} {
  func.func @_dssim_kernel(%arg0: i32, %arg1: memref<2x3x16x16xf32, #tpu.memory_space<vmem>>, %arg2: memref<2x3x16x16xf32, #tpu.memory_space<vmem>>, %arg3: memref<1x8x128xf32, #tpu.memory_space<vmem>>) attributes {dimension_semantics = [#tpu.dimension_semantics<parallel>], iteration_bounds = array<i64: 2>, scalar_prefetch = 0 : i64, scratch_operands = 0 : i64, tpu.core_type = #tpu.core_type<tc>, window_params = [{transform_indices = @transform_0, window_bounds = array<i64: 2, 3, 16, 16>}, {transform_indices = @transform_1, window_bounds = array<i64: 2, 3, 16, 16>}, {transform_indices = @transform_2, window_bounds = array<i64: 1, 8, 128>}]} {
    %c0 = arith.constant 0 : index
    %c0_0 = arith.constant 0 : index
    %c0_1 = arith.constant 0 : index
    %c0_2 = arith.constant 0 : index
    %0 = vector.load %arg2[%c0, %c0_0, %c0_1, %c0_2] : memref<2x3x16x16xf32, #tpu.memory_space<vmem>>, vector<2x1x16x16xf32>
    %1 = vector.shape_cast %0 : vector<2x1x16x16xf32> to vector<2x16x16xf32>
    %c0_3 = arith.constant 0 : index
    %c0_4 = arith.constant 0 : index
    %c0_5 = arith.constant 0 : index
    %c0_6 = arith.constant 0 : index
    %2 = vector.load %arg1[%c0_3, %c0_4, %c0_5, %c0_6] : memref<2x3x16x16xf32, #tpu.memory_space<vmem>>, vector<2x1x16x16xf32>
    %3 = vector.shape_cast %2 : vector<2x1x16x16xf32> to vector<2x16x16xf32>
    %4 = arith.mulf %1, %1 : vector<2x16x16xf32>
    %5 = arith.mulf %3, %3 : vector<2x16x16xf32>
    %6 = arith.mulf %1, %3 : vector<2x16x16xf32>
    %c0_7 = arith.constant 0 : index
    %c1 = arith.constant 1 : index
    %c0_8 = arith.constant 0 : index
    %c0_9 = arith.constant 0 : index
    %7 = vector.load %arg2[%c0_7, %c1, %c0_8, %c0_9] : memref<2x3x16x16xf32, #tpu.memory_space<vmem>>, vector<2x1x16x16xf32>
    %8 = vector.shape_cast %7 : vector<2x1x16x16xf32> to vector<2x16x16xf32>
    %c0_10 = arith.constant 0 : index
    %c1_11 = arith.constant 1 : index
    %c0_12 = arith.constant 0 : index
    %c0_13 = arith.constant 0 : index
    %9 = vector.load %arg1[%c0_10, %c1_11, %c0_12, %c0_13] : memref<2x3x16x16xf32, #tpu.memory_space<vmem>>, vector<2x1x16x16xf32>
    %10 = vector.shape_cast %9 : vector<2x1x16x16xf32> to vector<2x16x16xf32>
    %11 = arith.addf %1, %8 : vector<2x16x16xf32>
    %12 = arith.addf %3, %10 : vector<2x16x16xf32>
    %13 = arith.mulf %8, %8 : vector<2x16x16xf32>
    %14 = arith.addf %4, %13 : vector<2x16x16xf32>
    %15 = arith.mulf %10, %10 : vector<2x16x16xf32>
    %16 = arith.addf %5, %15 : vector<2x16x16xf32>
    %17 = arith.mulf %8, %10 : vector<2x16x16xf32>
    %18 = arith.addf %6, %17 : vector<2x16x16xf32>
    %c0_14 = arith.constant 0 : index
    %c2 = arith.constant 2 : index
    %c0_15 = arith.constant 0 : index
    %c0_16 = arith.constant 0 : index
    %19 = vector.load %arg2[%c0_14, %c2, %c0_15, %c0_16] : memref<2x3x16x16xf32, #tpu.memory_space<vmem>>, vector<2x1x16x16xf32>
    %20 = vector.shape_cast %19 : vector<2x1x16x16xf32> to vector<2x16x16xf32>
    %c0_17 = arith.constant 0 : index
    %c2_18 = arith.constant 2 : index
    %c0_19 = arith.constant 0 : index
    %c0_20 = arith.constant 0 : index
    %21 = vector.load %arg1[%c0_17, %c2_18, %c0_19, %c0_20] : memref<2x3x16x16xf32, #tpu.memory_space<vmem>>, vector<2x1x16x16xf32>
    %22 = vector.shape_cast %21 : vector<2x1x16x16xf32> to vector<2x16x16xf32>
    %23 = arith.addf %11, %20 : vector<2x16x16xf32>
    %24 = arith.addf %12, %22 : vector<2x16x16xf32>
    %25 = arith.mulf %20, %20 : vector<2x16x16xf32>
    %26 = arith.addf %14, %25 : vector<2x16x16xf32>
    %27 = arith.mulf %22, %22 : vector<2x16x16xf32>
    %28 = arith.addf %16, %27 : vector<2x16x16xf32>
    %29 = arith.mulf %20, %22 : vector<2x16x16xf32>
    %30 = arith.addf %18, %29 : vector<2x16x16xf32>
    %cst = arith.constant 0.000000e+00 : f32
    %31 = vector.broadcast %cst : f32 to vector<2x16x1xf32>
    %32 = vector.extract_strided_slice %23 {offsets = [0, 0, 0], sizes = [2, 16, 15], strides = [1, 1, 1]} : vector<2x16x16xf32> to vector<2x16x15xf32>
    %33 = tpu.concatenate %31, %32 in 2 : vector<2x16x1xf32>, vector<2x16x15xf32> -> vector<2x16x16xf32>
    %34 = arith.addf %23, %33 : vector<2x16x16xf32>
    %cst_21 = arith.constant 0.000000e+00 : f32
    %35 = vector.broadcast %cst_21 : f32 to vector<2x16x1xf32>
    %36 = vector.extract_strided_slice %23 {offsets = [0, 0, 1], sizes = [2, 16, 15], strides = [1, 1, 1]} : vector<2x16x16xf32> to vector<2x16x15xf32>
    %37 = tpu.concatenate %36, %35 in 2 : vector<2x16x15xf32>, vector<2x16x1xf32> -> vector<2x16x16xf32>
    %38 = arith.addf %34, %37 : vector<2x16x16xf32>
    %cst_22 = arith.constant 0.000000e+00 : f32
    %39 = vector.broadcast %cst_22 : f32 to vector<2x1x16xf32>
    %40 = vector.extract_strided_slice %38 {offsets = [0, 0, 0], sizes = [2, 15, 16], strides = [1, 1, 1]} : vector<2x16x16xf32> to vector<2x15x16xf32>
    %41 = tpu.concatenate %39, %40 in 1 : vector<2x1x16xf32>, vector<2x15x16xf32> -> vector<2x16x16xf32>
    %42 = arith.addf %38, %41 : vector<2x16x16xf32>
    %cst_23 = arith.constant 0.000000e+00 : f32
    %43 = vector.broadcast %cst_23 : f32 to vector<2x1x16xf32>
    %44 = vector.extract_strided_slice %38 {offsets = [0, 1, 0], sizes = [2, 15, 16], strides = [1, 1, 1]} : vector<2x16x16xf32> to vector<2x15x16xf32>
    %45 = tpu.concatenate %44, %43 in 1 : vector<2x15x16xf32>, vector<2x1x16xf32> -> vector<2x16x16xf32>
    %46 = arith.addf %42, %45 : vector<2x16x16xf32>
    %cst_24 = arith.constant 0.000000e+00 : f32
    %47 = vector.broadcast %cst_24 : f32 to vector<2x16x1xf32>
    %48 = vector.extract_strided_slice %24 {offsets = [0, 0, 0], sizes = [2, 16, 15], strides = [1, 1, 1]} : vector<2x16x16xf32> to vector<2x16x15xf32>
    %49 = tpu.concatenate %47, %48 in 2 : vector<2x16x1xf32>, vector<2x16x15xf32> -> vector<2x16x16xf32>
    %50 = arith.addf %24, %49 : vector<2x16x16xf32>
    %cst_25 = arith.constant 0.000000e+00 : f32
    %51 = vector.broadcast %cst_25 : f32 to vector<2x16x1xf32>
    %52 = vector.extract_strided_slice %24 {offsets = [0, 0, 1], sizes = [2, 16, 15], strides = [1, 1, 1]} : vector<2x16x16xf32> to vector<2x16x15xf32>
    %53 = tpu.concatenate %52, %51 in 2 : vector<2x16x15xf32>, vector<2x16x1xf32> -> vector<2x16x16xf32>
    %54 = arith.addf %50, %53 : vector<2x16x16xf32>
    %cst_26 = arith.constant 0.000000e+00 : f32
    %55 = vector.broadcast %cst_26 : f32 to vector<2x1x16xf32>
    %56 = vector.extract_strided_slice %54 {offsets = [0, 0, 0], sizes = [2, 15, 16], strides = [1, 1, 1]} : vector<2x16x16xf32> to vector<2x15x16xf32>
    %57 = tpu.concatenate %55, %56 in 1 : vector<2x1x16xf32>, vector<2x15x16xf32> -> vector<2x16x16xf32>
    %58 = arith.addf %54, %57 : vector<2x16x16xf32>
    %cst_27 = arith.constant 0.000000e+00 : f32
    %59 = vector.broadcast %cst_27 : f32 to vector<2x1x16xf32>
    %60 = vector.extract_strided_slice %54 {offsets = [0, 1, 0], sizes = [2, 15, 16], strides = [1, 1, 1]} : vector<2x16x16xf32> to vector<2x15x16xf32>
    %61 = tpu.concatenate %60, %59 in 1 : vector<2x15x16xf32>, vector<2x1x16xf32> -> vector<2x16x16xf32>
    %62 = arith.addf %58, %61 : vector<2x16x16xf32>
    %cst_28 = arith.constant 0.000000e+00 : f32
    %63 = vector.broadcast %cst_28 : f32 to vector<2x16x1xf32>
    %64 = vector.extract_strided_slice %26 {offsets = [0, 0, 0], sizes = [2, 16, 15], strides = [1, 1, 1]} : vector<2x16x16xf32> to vector<2x16x15xf32>
    %65 = tpu.concatenate %63, %64 in 2 : vector<2x16x1xf32>, vector<2x16x15xf32> -> vector<2x16x16xf32>
    %66 = arith.addf %26, %65 : vector<2x16x16xf32>
    %cst_29 = arith.constant 0.000000e+00 : f32
    %67 = vector.broadcast %cst_29 : f32 to vector<2x16x1xf32>
    %68 = vector.extract_strided_slice %26 {offsets = [0, 0, 1], sizes = [2, 16, 15], strides = [1, 1, 1]} : vector<2x16x16xf32> to vector<2x16x15xf32>
    %69 = tpu.concatenate %68, %67 in 2 : vector<2x16x15xf32>, vector<2x16x1xf32> -> vector<2x16x16xf32>
    %70 = arith.addf %66, %69 : vector<2x16x16xf32>
    %cst_30 = arith.constant 0.000000e+00 : f32
    %71 = vector.broadcast %cst_30 : f32 to vector<2x1x16xf32>
    %72 = vector.extract_strided_slice %70 {offsets = [0, 0, 0], sizes = [2, 15, 16], strides = [1, 1, 1]} : vector<2x16x16xf32> to vector<2x15x16xf32>
    %73 = tpu.concatenate %71, %72 in 1 : vector<2x1x16xf32>, vector<2x15x16xf32> -> vector<2x16x16xf32>
    %74 = arith.addf %70, %73 : vector<2x16x16xf32>
    %cst_31 = arith.constant 0.000000e+00 : f32
    %75 = vector.broadcast %cst_31 : f32 to vector<2x1x16xf32>
    %76 = vector.extract_strided_slice %70 {offsets = [0, 1, 0], sizes = [2, 15, 16], strides = [1, 1, 1]} : vector<2x16x16xf32> to vector<2x15x16xf32>
    %77 = tpu.concatenate %76, %75 in 1 : vector<2x15x16xf32>, vector<2x1x16xf32> -> vector<2x16x16xf32>
    %78 = arith.addf %74, %77 : vector<2x16x16xf32>
    %cst_32 = arith.constant 0.000000e+00 : f32
    %79 = vector.broadcast %cst_32 : f32 to vector<2x16x1xf32>
    %80 = vector.extract_strided_slice %28 {offsets = [0, 0, 0], sizes = [2, 16, 15], strides = [1, 1, 1]} : vector<2x16x16xf32> to vector<2x16x15xf32>
    %81 = tpu.concatenate %79, %80 in 2 : vector<2x16x1xf32>, vector<2x16x15xf32> -> vector<2x16x16xf32>
    %82 = arith.addf %28, %81 : vector<2x16x16xf32>
    %cst_33 = arith.constant 0.000000e+00 : f32
    %83 = vector.broadcast %cst_33 : f32 to vector<2x16x1xf32>
    %84 = vector.extract_strided_slice %28 {offsets = [0, 0, 1], sizes = [2, 16, 15], strides = [1, 1, 1]} : vector<2x16x16xf32> to vector<2x16x15xf32>
    %85 = tpu.concatenate %84, %83 in 2 : vector<2x16x15xf32>, vector<2x16x1xf32> -> vector<2x16x16xf32>
    %86 = arith.addf %82, %85 : vector<2x16x16xf32>
    %cst_34 = arith.constant 0.000000e+00 : f32
    %87 = vector.broadcast %cst_34 : f32 to vector<2x1x16xf32>
    %88 = vector.extract_strided_slice %86 {offsets = [0, 0, 0], sizes = [2, 15, 16], strides = [1, 1, 1]} : vector<2x16x16xf32> to vector<2x15x16xf32>
    %89 = tpu.concatenate %87, %88 in 1 : vector<2x1x16xf32>, vector<2x15x16xf32> -> vector<2x16x16xf32>
    %90 = arith.addf %86, %89 : vector<2x16x16xf32>
    %cst_35 = arith.constant 0.000000e+00 : f32
    %91 = vector.broadcast %cst_35 : f32 to vector<2x1x16xf32>
    %92 = vector.extract_strided_slice %86 {offsets = [0, 1, 0], sizes = [2, 15, 16], strides = [1, 1, 1]} : vector<2x16x16xf32> to vector<2x15x16xf32>
    %93 = tpu.concatenate %92, %91 in 1 : vector<2x15x16xf32>, vector<2x1x16xf32> -> vector<2x16x16xf32>
    %94 = arith.addf %90, %93 : vector<2x16x16xf32>
    %cst_36 = arith.constant 0.000000e+00 : f32
    %95 = vector.broadcast %cst_36 : f32 to vector<2x16x1xf32>
    %96 = vector.extract_strided_slice %30 {offsets = [0, 0, 0], sizes = [2, 16, 15], strides = [1, 1, 1]} : vector<2x16x16xf32> to vector<2x16x15xf32>
    %97 = tpu.concatenate %95, %96 in 2 : vector<2x16x1xf32>, vector<2x16x15xf32> -> vector<2x16x16xf32>
    %98 = arith.addf %30, %97 : vector<2x16x16xf32>
    %cst_37 = arith.constant 0.000000e+00 : f32
    %99 = vector.broadcast %cst_37 : f32 to vector<2x16x1xf32>
    %100 = vector.extract_strided_slice %30 {offsets = [0, 0, 1], sizes = [2, 16, 15], strides = [1, 1, 1]} : vector<2x16x16xf32> to vector<2x16x15xf32>
    %101 = tpu.concatenate %100, %99 in 2 : vector<2x16x15xf32>, vector<2x16x1xf32> -> vector<2x16x16xf32>
    %102 = arith.addf %98, %101 : vector<2x16x16xf32>
    %cst_38 = arith.constant 0.000000e+00 : f32
    %103 = vector.broadcast %cst_38 : f32 to vector<2x1x16xf32>
    %104 = vector.extract_strided_slice %102 {offsets = [0, 0, 0], sizes = [2, 15, 16], strides = [1, 1, 1]} : vector<2x16x16xf32> to vector<2x15x16xf32>
    %105 = tpu.concatenate %103, %104 in 1 : vector<2x1x16xf32>, vector<2x15x16xf32> -> vector<2x16x16xf32>
    %106 = arith.addf %102, %105 : vector<2x16x16xf32>
    %cst_39 = arith.constant 0.000000e+00 : f32
    %107 = vector.broadcast %cst_39 : f32 to vector<2x1x16xf32>
    %108 = vector.extract_strided_slice %102 {offsets = [0, 1, 0], sizes = [2, 15, 16], strides = [1, 1, 1]} : vector<2x16x16xf32> to vector<2x15x16xf32>
    %109 = tpu.concatenate %108, %107 in 1 : vector<2x15x16xf32>, vector<2x1x16xf32> -> vector<2x16x16xf32>
    %110 = arith.addf %106, %109 : vector<2x16x16xf32>
    %cst_40 = arith.constant 0.0370370373 : f32
    %111 = vector.broadcast %cst_40 : f32 to vector<2x16x16xf32>
    %112 = arith.mulf %46, %111 : vector<2x16x16xf32>
    %cst_41 = arith.constant 0.0370370373 : f32
    %113 = vector.broadcast %cst_41 : f32 to vector<2x16x16xf32>
    %114 = arith.mulf %62, %113 : vector<2x16x16xf32>
    %cst_42 = arith.constant 2.700000e+01 : f32
    %115 = vector.broadcast %cst_42 : f32 to vector<2x16x16xf32>
    %116 = arith.mulf %115, %112 : vector<2x16x16xf32>
    %117 = arith.mulf %116, %112 : vector<2x16x16xf32>
    %118 = arith.subf %78, %117 : vector<2x16x16xf32>
    %cst_43 = arith.constant 0.0384615399 : f32
    %119 = vector.broadcast %cst_43 : f32 to vector<2x16x16xf32>
    %120 = arith.mulf %118, %119 : vector<2x16x16xf32>
    %cst_44 = arith.constant 2.700000e+01 : f32
    %121 = vector.broadcast %cst_44 : f32 to vector<2x16x16xf32>
    %122 = arith.mulf %121, %114 : vector<2x16x16xf32>
    %123 = arith.mulf %122, %114 : vector<2x16x16xf32>
    %124 = arith.subf %94, %123 : vector<2x16x16xf32>
    %cst_45 = arith.constant 0.0384615399 : f32
    %125 = vector.broadcast %cst_45 : f32 to vector<2x16x16xf32>
    %126 = arith.mulf %124, %125 : vector<2x16x16xf32>
    %cst_46 = arith.constant 0.0370370373 : f32
    %127 = vector.broadcast %cst_46 : f32 to vector<2x16x16xf32>
    %128 = arith.mulf %110, %127 : vector<2x16x16xf32>
    %129 = arith.mulf %112, %114 : vector<2x16x16xf32>
    %130 = arith.subf %128, %129 : vector<2x16x16xf32>
    %cst_47 = arith.constant 2.000000e+00 : f32
    %131 = vector.broadcast %cst_47 : f32 to vector<2x16x16xf32>
    %132 = arith.mulf %131, %112 : vector<2x16x16xf32>
    %133 = arith.mulf %132, %114 : vector<2x16x16xf32>
    %cst_48 = arith.constant 9.99999974E-5 : f32
    %134 = vector.broadcast %cst_48 : f32 to vector<2x16x16xf32>
    %135 = arith.addf %133, %134 : vector<2x16x16xf32>
    %cst_49 = arith.constant 2.000000e+00 : f32
    %136 = vector.broadcast %cst_49 : f32 to vector<2x16x16xf32>
    %137 = arith.mulf %136, %130 : vector<2x16x16xf32>
    %cst_50 = arith.constant 8.99999984E-4 : f32
    %138 = vector.broadcast %cst_50 : f32 to vector<2x16x16xf32>
    %139 = arith.addf %137, %138 : vector<2x16x16xf32>
    %140 = arith.mulf %135, %139 : vector<2x16x16xf32>
    %141 = arith.mulf %112, %112 : vector<2x16x16xf32>
    %142 = arith.mulf %114, %114 : vector<2x16x16xf32>
    %143 = arith.addf %141, %142 : vector<2x16x16xf32>
    %cst_51 = arith.constant 9.99999974E-5 : f32
    %144 = vector.broadcast %cst_51 : f32 to vector<2x16x16xf32>
    %145 = arith.addf %143, %144 : vector<2x16x16xf32>
    %146 = arith.addf %126, %120 : vector<2x16x16xf32>
    %cst_52 = arith.constant 8.99999984E-4 : f32
    %147 = vector.broadcast %cst_52 : f32 to vector<2x16x16xf32>
    %148 = arith.addf %146, %147 : vector<2x16x16xf32>
    %149 = arith.mulf %145, %148 : vector<2x16x16xf32>
    %150 = tpu.reciprocal %149 : vector<2x16x16xf32> -> vector<2x16x16xf32>
    %151 = arith.mulf %140, %150 : vector<2x16x16xf32>
    %cst_53 = arith.constant 1.000000e+00 : f32
    %152 = vector.broadcast %cst_53 : f32 to vector<2x16x16xf32>
    %153 = arith.subf %152, %151 : vector<2x16x16xf32>
    %cst_54 = arith.constant 5.000000e-01 : f32
    %154 = vector.broadcast %cst_54 : f32 to vector<2x16x16xf32>
    %155 = arith.mulf %153, %154 : vector<2x16x16xf32>
    %cst_55 = arith.constant dense<0.000000e+00> : vector<16xf32>
    %156 = vector.multi_reduction <add>, %155, %cst_55 [0, 1] : vector<2x16x16xf32> to vector<16xf32>
    %157 = vector.shape_cast %156 : vector<16xf32> to vector<1x16xf32>
    %cst_56 = arith.constant dense<0.000000e+00> : vector<1xf32>
    %158 = vector.multi_reduction <add>, %157, %cst_56 [1] : vector<1x16xf32> to vector<1xf32>
    %159 = vector.shape_cast %158 : vector<1xf32> to vector<1x1xf32>
    %160 = vector.extract %159[0, 0] : f32 from vector<1x1xf32>
    %161 = vector.broadcast %160 : f32 to vector<1x8x128xf32>
    %c0_57 = arith.constant 0 : index
    %c0_58 = arith.constant 0 : index
    %c0_59 = arith.constant 0 : index
    %162 = vector.load %arg3[%c0_57, %c0_58, %c0_59] : memref<1x8x128xf32, #tpu.memory_space<vmem>>, vector<1x8x128xf32>
    tpu.vector_store %arg3[%c0_57, %c0_58, %c0_59], %161 {strides = array<i32>} : memref<1x8x128xf32, #tpu.memory_space<vmem>>, vector<1x8x128xf32>,
    return
  }
  func.func @transform_0(%arg0: i32) -> (i32, i32, i32, i32) {
    %c0_i32 = arith.constant 0 : i32
    %c0_i32_0 = arith.constant 0 : i32
    %c0_i32_1 = arith.constant 0 : i32
    %c0_i32_2 = arith.constant 0 : i32
    return %arg0, %c0_i32, %c0_i32_0, %c0_i32_1 : i32, i32, i32, i32
  }
  func.func @transform_1(%arg0: i32) -> (i32, i32, i32, i32) {
    %c0_i32 = arith.constant 0 : i32
    %c0_i32_0 = arith.constant 0 : i32
    %c0_i32_1 = arith.constant 0 : i32
    %c0_i32_2 = arith.constant 0 : i32
    return %arg0, %c0_i32, %c0_i32_0, %c0_i32_1 : i32, i32, i32, i32
  }
  func.func @transform_2(%arg0: i32) -> (i32, i32, i32) {
    %c0_i32 = arith.constant 0 : i32
    %c0_i32_0 = arith.constant 0 : i32
    %c0_i32_1 = arith.constant 0 : i32
    return %arg0, %c0_i32, %c0_i32_0 : i32, i32, i32
  }
}

</mosaic_0001>

<llo_original>
// kernel: tpu_custom_call.1
$region0: #{tpu_custom_call.1}
  #allocation0 [shape = 'u32[]', space=smem, size = 0x4, offset = 0x4, fixed_abs, tag = 'smem constant byte address 0x4 - core index']
  #allocation1 [shape = 'u32[144,128]{1,0:T(1,128)}', space=vmem, size = 0x12000, scoped, tag = 'internal scratch']
  #allocation8 [shape = 's32[]', space=sflag, size = 0x4, offset = 0, fixed_abs, tag = 'sflag constant byte address 0x0 - dummy sync flag']
  #allocation10 [shape = 's32[]', space=sflag, size = 0x4, offset = 0, fixed_abs, tag = 'sflag constant byte address 0x0 - dummy sync flag']
  %s0 = inlined_call_operand.hbm [shape: f32[4,4,16,16], index: 0, kind: input, shape index: {}]
  %s1 = inlined_call_operand.hbm [shape: f32[4,4,16,16], index: 1, kind: input, shape index: {}]
  %s2 = inlined_call_operand.hbm [shape: f32[2,8,128], index: 2, kind: output, shape index: {}]
  %s3 = sld [smem:[#allocation0]]
  $region49: #{tpu_custom_call.1} parent=0
    _
  %s5 = ssub.s32 1, %s3
  %s6 = scalar_select 0, %s5, %s3
  $region1: #{tpu_custom_call.1} parent=0
    #allocation2 [shape = 'u8[98304]{0}', space=vmem, size = 0x18000, scoped, tag = 'input window, operand 0']
    #allocation3 [shape = 's32[2]{0}', space=sflag, size = 0x8, scoped, tag = 'scoped memory for tpu_custom_call.1']
    #allocation4 [shape = 's32[2]{0}', space=sflag, size = 0x8, scoped, tag = 'scoped memory for tpu_custom_call.1']
    #allocation5 [shape = 'u8[98304]{0}', space=vmem, size = 0x18000, scoped, tag = 'input window, operand 1']
    #allocation6 [shape = 's32[2]{0}', space=sflag, size = 0x8, scoped, tag = 'scoped memory for tpu_custom_call.1']
    #allocation7 [shape = 'u8[8192]{0}', space=vmem, size = 0x2000, scoped, tag = 'output window, operand 0']
    %7 = vsyncpa [#allocation3], 0
    %s8 = scalar_lea.sflag [#allocation3], 1
    %9 = vsyncpa %s8, 0
    %10 = vsyncpa [#allocation6], 0
    %s11 = scalar_lea.sflag [#allocation6], 1
    %12 = vsyncpa %s11, 0
    %13 = vsyncpa [#allocation4], 0
    %s14 = scalar_lea.sflag [#allocation4], 1
    %15 = vsyncpa %s14, 0
    loop: start=0, step=1, limit=4
    $region2: #{tpu_custom_call.1} parent=1 // loop_pre_header
      _
    $region3: #{tpu_custom_call.1} parent=1 // loop_header
      %s17 = sphi 0, %s21
      %p18 = scmp.ge.s32.totalorder %s17, 4
      %s27 = sphi 0, %s29
      %s30 = sphi 0, %s27
      %s31 = sphi 0, %s30
      %s47 = sphi 0, %s31
      %s53 = sphi 0, %s55
      %s56 = sphi 0, %s53
      %s57 = sphi 0, %s56
      %s73 = sphi 0, %s57
      %s79 = sphi 0, %s81
      %s82 = sphi 0, %s79
      %s83 = sphi 0, %s82
      %s99 = sphi 0, %s83
    $region4: #{tpu_custom_call.1} parent=1 // loop_header_branch
      %20 = sbr.rel (%p18) target = $region8
    $region5: #{tpu_custom_call.1} parent=1 // loop_body
      %s22 = ssub.s32 %s17, 1
      %s23 = ssub.s32 %s17, 2
      %s24 = sadd.s32 %s17, 1
      %s25 = ssub.s32 %s17, %s24
      %p26 = scmp.eq.s32.totalorder %s25, 0
      %s28 = sadd.s32 %s27, 1
      %s29 = scalar_select %p26, %s27, %s28
      %p32 = pneg %p26
      %p33 = scmp.eq.s32.totalorder %s17, 1
      %p34 = por %p32, %p33
      %p35 = scmp.ne.s32.totalorder %s27, %s30
      %p36 = scmp.eq.s32.totalorder %s17, 0
      %p37 = por %p35, %p36
      %p38 = scmp.ne.s32.totalorder %s27, %s30
      %p39 = scmp.eq.s32.totalorder %s22, 1
      %p40 = por %p38, %p39
      %p41 = scmp.ne.s32.totalorder %s30, %s31
      %p42 = scmp.eq.s32.totalorder %s22, 0
      %p43 = por %p41, %p42
      %p44 = scmp.ne.s32.totalorder %s30, %s31
      %p45 = scmp.eq.s32.totalorder %s23, 1
      %p46 = por %p44, %p45
      %p48 = scmp.ne.s32.totalorder %s31, %s47
      %p49 = scmp.eq.s32.totalorder %s23, 0
      %p50 = por %p48, %p49
      %s51 = ssub.s32 %s17, %s24
      %p52 = scmp.eq.s32.totalorder %s51, 0
      %s54 = sadd.s32 %s53, 1
      %s55 = scalar_select %p52, %s53, %s54
      %p58 = pneg %p52
      %p59 = scmp.eq.s32.totalorder %s17, 1
      %p60 = por %p58, %p59
      %p61 = scmp.ne.s32.totalorder %s53, %s56
      %p62 = scmp.eq.s32.totalorder %s17, 0
      %p63 = por %p61, %p62
      %p64 = scmp.ne.s32.totalorder %s53, %s56
      %p65 = scmp.eq.s32.totalorder %s22, 1
      %p66 = por %p64, %p65
      %p67 = scmp.ne.s32.totalorder %s56, %s57
      %p68 = scmp.eq.s32.totalorder %s22, 0
      %p69 = por %p67, %p68
      %p70 = scmp.ne.s32.totalorder %s56, %s57
      %p71 = scmp.eq.s32.totalorder %s23, 1
      %p72 = por %p70, %p71
      %p74 = scmp.ne.s32.totalorder %s57, %s73
      %p75 = scmp.eq.s32.totalorder %s23, 0
      %p76 = por %p74, %p75
      %s77 = ssub.s32 %s17, %s24
      %p78 = scmp.eq.s32.totalorder %s77, 0
      %s80 = sadd.s32 %s79, 1
      %s81 = scalar_select %p78, %s79, %s80
      %p84 = pneg %p78
      %p85 = scmp.eq.s32.totalorder %s17, 1
      %p86 = por %p84, %p85
      %p87 = scmp.ne.s32.totalorder %s79, %s82
      %p88 = scmp.eq.s32.totalorder %s17, 0
      %p89 = por %p87, %p88
      %p90 = scmp.ne.s32.totalorder %s79, %s82
      %p91 = scmp.eq.s32.totalorder %s22, 1
      %p92 = por %p90, %p91
      %p93 = scmp.ne.s32.totalorder %s82, %s83
      %p94 = scmp.eq.s32.totalorder %s22, 0
      %p95 = por %p93, %p94
      %p96 = scmp.ne.s32.totalorder %s82, %s83
      %p97 = scmp.eq.s32.totalorder %s23, 1
      %p98 = por %p96, %p97
      %p100 = scmp.ne.s32.totalorder %s83, %s99
      %p101 = scmp.eq.s32.totalorder %s23, 0
      %p102 = por %p100, %p101
      %p103 = scmp.le.s32.totalorder 1, %s17
      %p104 = scmp.lt.s32.totalorder %s17, 3
      %p105 = pnand %p103, %p104
      %p106 = pneg %p105
      // Predicated region
      $region9: #{tpu_custom_call.1} parent=5 // pred_check
        _
      $region10: #{tpu_custom_call.1} parent=5 // pred_check_branch
        %108 = sbr.rel (%p105) target = $region12
      $region11: #{tpu_custom_call.1} parent=5 // pred_region
        %s109 = ssub.s32 %s17, 1
      $region12: #{tpu_custom_call.1} parent=5 // pred_fallthru
        _
      %p110 = scmp.lt.s32.totalorder %s17, 2
      // Predicated region
      $region13: #{tpu_custom_call.1} parent=5 // pred_check
        %p111 = pneg %p110
      $region14: #{tpu_custom_call.1} parent=5 // pred_check_branch
        %113 = sbr.rel (%p111) target = $region16
      $region15: #{tpu_custom_call.1} parent=5 // pred_region
        // Predicated region
        $region17: #{tpu_custom_call.1} parent=15 // pred_check
          %p114 = pneg %p37
        $region18: #{tpu_custom_call.1} parent=15 // pred_check_branch
          %116 = sbr.rel (%p114) target = $region20
        $region19: #{tpu_custom_call.1} parent=15 // pred_region
          #allocation9 [shape = 'u32[6]{0}', space=smem, size = 0x18, scoped, tag = 'DMA stride descriptor']
          %s117 = sand.u32 %s27, 1
          %s118 = scalar_lea.sflag [#allocation3], %s117
          %s119 = sand.u32 %s27, 1
          %s120 = smul.addr %s119, 96
          %s121 = scalar_lea.vmem [#allocation2], %s120
          %s122 = smul.u32 2, %s17
          %s124 = ssub.s32 1536, 1536
          %125 = vsyncadd %s118, %s124
          %s126 = smul.addr %s122, 8
          %s127 = smul.addr %s126, 128
          %s128 = scalar_lea.hbm %s0, %s127
          %s130 = sshll.u32 1, 14
          %s131 = sxor.u32 4294967295, %s130
          %s133 = sld [smem:[#allocation0]]
          %s134 = sadd.s32 2, %s133
          %s136 = sshll.u32 7, 26
          %s137 = sxor.u32 4294967295, %s136
          %s138 = sand.u32 0, %s137
          %s139 = sshll.u32 %s134, 26
          %s140 = sor.u32 %s138, %s139
          %s141 = sshll.u32 %s121, 4
          %s142 = int_to_ptr.vmem [resolvable:$true] %s141
          %148 = sst [smem:[#allocation9]] 1024
          %s149 = scalar_lea.smem [#allocation9], 1
          %150 = sst [smem:[%s149]] 768
          %s151 = scalar_lea.smem [#allocation9], 2
          %152 = sst [smem:[%s151]] 6
          %s153 = scalar_lea.smem [#allocation9], 3
          %154 = sst [smem:[%s153]] 128
          %s155 = scalar_lea.smem [#allocation9], 4
          %156 = sst [smem:[%s155]] 128
          %s157 = scalar_lea.smem [#allocation9], 5
          %158 = sst [smem:[%s157]] 8
          %160 = dma.general %s128, 1536, %s142, %s118, [#allocation8], [#allocation9], %s140, 0
        $region20: #{tpu_custom_call.1} parent=15 // pred_fallthru
          _
        // Predicated region
        $region21: #{tpu_custom_call.1} parent=15 // pred_check
          %p161 = pneg %p63
        $region22: #{tpu_custom_call.1} parent=15 // pred_check_branch
          %163 = sbr.rel (%p161) target = $region24
        $region23: #{tpu_custom_call.1} parent=15 // pred_region
          #allocation11 [shape = 'u32[6]{0}', space=smem, size = 0x18, scoped, tag = 'DMA stride descriptor']
          %s164 = sand.u32 %s53, 1
          %s165 = scalar_lea.sflag [#allocation6], %s164
          %s166 = sand.u32 %s53, 1
          %s167 = smul.addr %s166, 96
          %s168 = scalar_lea.vmem [#allocation5], %s167
          %s169 = smul.u32 2, %s17
          %s171 = ssub.s32 1536, 1536
          %172 = vsyncadd %s165, %s171
          %s173 = smul.addr %s169, 8
          %s174 = smul.addr %s173, 128
          %s175 = scalar_lea.hbm %s1, %s174
          %s177 = sshll.u32 1, 14
          %s178 = sxor.u32 4294967295, %s177
          %s180 = sld [smem:[#allocation0]]
          %s181 = sadd.s32 2, %s180
          %s183 = sshll.u32 7, 26
          %s184 = sxor.u32 4294967295, %s183
          %s185 = sand.u32 0, %s184
          %s186 = sshll.u32 %s181, 26
          %s187 = sor.u32 %s185, %s186
          %s188 = sshll.u32 %s168, 4
          %s189 = int_to_ptr.vmem [resolvable:$true] %s188
          %195 = sst [smem:[#allocation11]] 1024
          %s196 = scalar_lea.smem [#allocation11], 1
          %197 = sst [smem:[%s196]] 768
          %s198 = scalar_lea.smem [#allocation11], 2
          %199 = sst [smem:[%s198]] 6
          %s200 = scalar_lea.smem [#allocation11], 3
          %201 = sst [smem:[%s200]] 128
          %s202 = scalar_lea.smem [#allocation11], 4
          %203 = sst [smem:[%s202]] 128
          %s204 = scalar_lea.smem [#allocation11], 5
          %205 = sst [smem:[%s204]] 8
          %207 = dma.general %s175, 1536, %s189, %s165, [#allocation10], [#allocation11], %s187, 0
        $region24: #{tpu_custom_call.1} parent=15 // pred_fallthru
          _
      $region16: #{tpu_custom_call.1} parent=5 // pred_fallthru
        _
      %p208 = scmp.le.s32.totalorder 1, %s17
      %p209 = scmp.lt.s32.totalorder %s17, 3
      %p210 = pnand %p208, %p209
      %p211 = pneg %p210
      // Predicated region
      $region25: #{tpu_custom_call.1} parent=5 // pred_check
        _
      $region26: #{tpu_custom_call.1} parent=5 // pred_check_branch
        %213 = sbr.rel (%p210) target = $region28
      $region27: #{tpu_custom_call.1} parent=5 // pred_region
        %s214 = ssub.s32 %s17, 1
        %s215 = sand.u32 %s30, 1
        %s216 = scalar_lea.sflag [#allocation3], %s215
        %s217 = sand.u32 %s30, 1
        %s218 = smul.addr %s217, 96
        %s219 = scalar_lea.vmem [#allocation2], %s218
        // Predicated region
        $region29: #{tpu_custom_call.1} parent=27 // pred_check
          %p220 = pneg %p43
        $region30: #{tpu_custom_call.1} parent=27 // pred_check_branch
          %222 = sbr.rel (%p220) target = $region32
        $region31: #{tpu_custom_call.1} parent=27 // pred_region
          %223 = dma.done %s216, 1536
        $region32: #{tpu_custom_call.1} parent=27 // pred_fallthru
          _
        %s224 = sand.u32 %s56, 1
        %s225 = scalar_lea.sflag [#allocation6], %s224
        %s226 = sand.u32 %s56, 1
        %s227 = smul.addr %s226, 96
        %s228 = scalar_lea.vmem [#allocation5], %s227
        // Predicated region
        $region33: #{tpu_custom_call.1} parent=27 // pred_check
          %p229 = pneg %p69
        $region34: #{tpu_custom_call.1} parent=27 // pred_check_branch
          %231 = sbr.rel (%p229) target = $region36
        $region35: #{tpu_custom_call.1} parent=27 // pred_region
          %232 = dma.done %s225, 1536
        $region36: #{tpu_custom_call.1} parent=27 // pred_fallthru
          _
        %s233 = sand.u32 %s30, 1
        %s234 = scalar_lea.sflag [#allocation3], %s233
        %s235 = sand.u32 %s30, 1
        %s236 = smul.addr %s235, 96
        %s237 = scalar_lea.vmem [#allocation2], %s236
        %p238 = pneg %p43
        %p239 = pneg %p40
        %s240 = sand.u32 %s56, 1
        %s241 = scalar_lea.sflag [#allocation6], %s240
        %s242 = sand.u32 %s56, 1
        %s243 = smul.addr %s242, 96
        %s244 = scalar_lea.vmem [#allocation5], %s243
        %p245 = pneg %p69
        %p246 = pneg %p66
        %p247 = pneg %p95
        %p248 = pneg %p92
        %s249 = sand.u32 %s82, 1
        %s250 = scalar_lea.sflag [#allocation4], %s249
        %s251 = sand.u32 %s82, 1
        %s252 = smul.addr %s251, 8
        %s253 = scalar_lea.vmem [#allocation7], %s252
        %s254 = smul.u32 2, %s22
        %s255 = smul.u32 2, %s22
        %v256 = vlaneseq
        %v257 = vand.u32 %v256, 127
        %vm258 = vcmp.ge.s32.totalorder %v257, 1
        %vm259 = vcmp.lt.s32.totalorder %v257, 15
        %v260 = vlaneseq
        %v261 = vshrl.u32 %v260, 7
        %v262 = vadd.s32 %v261, 8
        %vm263 = vcmp.ge.s32.totalorder %v261, 1
        %vm264 = vcmp.ge.s32.totalorder %v262, 1
        %vm265 = vcmp.lt.s32.totalorder %v261, 15
        %vm266 = vcmp.lt.s32.totalorder %v262, 15
        %v267 = vld [vmem:[%s228] sm:$0xff]
        %v268 = vld [vmem:[%s228 + $0x8] sm:$0xff]
        %v269 = vld [vmem:[%s228 + $0x30] sm:$0xff]
        %v270 = vld [vmem:[%s228 + $0x38] sm:$0xff]
        %v271 = vld [vmem:[%s219] sm:$0xff]
        %v272 = vld [vmem:[%s219 + $0x8] sm:$0xff]
        %v273 = vld [vmem:[%s219 + $0x30] sm:$0xff]
        %v274 = vld [vmem:[%s219 + $0x38] sm:$0xff]
        %v275 = vmul.f32 %v267, %v267
        %v276 = vmul.f32 %v268, %v268
        %v277 = vmul.f32 %v269, %v269
        %v278 = vmul.f32 %v270, %v270
        %v279 = vmul.f32 %v271, %v271
        %v280 = vmul.f32 %v272, %v272
        %v281 = vmul.f32 %v273, %v273
        %v282 = vmul.f32 %v274, %v274
        %v283 = vmul.f32 %v267, %v271
        %v284 = vmul.f32 %v268, %v272
        %v285 = vmul.f32 %v269, %v273
        %v286 = vmul.f32 %v270, %v274
        %s287 = scalar_lea.vmem %s228, 16 [#allocation5]
        %v288 = vld [vmem:[%s287] sm:$0xff]
        %v289 = vld [vmem:[%s287 + $0x8] sm:$0xff]
        %v290 = vld [vmem:[%s287 + $0x30] sm:$0xff]
        %v291 = vld [vmem:[%s287 + $0x38] sm:$0xff]
        %s292 = scalar_lea.vmem %s219, 16 [#allocation2]
        %v293 = vld [vmem:[%s292] sm:$0xff]
        %v294 = vld [vmem:[%s292 + $0x8] sm:$0xff]
        %v295 = vld [vmem:[%s292 + $0x30] sm:$0xff]
        %v296 = vld [vmem:[%s292 + $0x38] sm:$0xff]
        %v297 = vadd.f32 %v267, %v288
        %v298 = vadd.f32 %v268, %v289
        %v299 = vadd.f32 %v269, %v290
        %v300 = vadd.f32 %v270, %v291
        %v301 = vadd.f32 %v271, %v293
        %v302 = vadd.f32 %v272, %v294
        %v303 = vadd.f32 %v273, %v295
        %v304 = vadd.f32 %v274, %v296
        %v305 = vmul.f32 %v288, %v288
        %v306 = vmul.f32 %v289, %v289
        %v307 = vmul.f32 %v290, %v290
        %v308 = vmul.f32 %v291, %v291
        %v309 = vadd.f32 %v275, %v305
        %v310 = vadd.f32 %v276, %v306
        %v311 = vadd.f32 %v277, %v307
        %v312 = vadd.f32 %v278, %v308
        %v313 = vmul.f32 %v293, %v293
        %v314 = vmul.f32 %v294, %v294
        %v315 = vmul.f32 %v295, %v295
        %v316 = vmul.f32 %v296, %v296
        %v317 = vadd.f32 %v279, %v313
        %v318 = vadd.f32 %v280, %v314
        %v319 = vadd.f32 %v281, %v315
        %v320 = vadd.f32 %v282, %v316
        %v321 = vmul.f32 %v288, %v293
        %v322 = vmul.f32 %v289, %v294
        %v323 = vmul.f32 %v290, %v295
        %v324 = vmul.f32 %v291, %v296
        %v325 = vadd.f32 %v283, %v321
        %v326 = vadd.f32 %v284, %v322
        %v327 = vadd.f32 %v285, %v323
        %v328 = vadd.f32 %v286, %v324
        %s329 = scalar_lea.vmem %s228, 32 [#allocation5]
        %v330 = vld [vmem:[%s329] sm:$0xff]
        %v331 = vld [vmem:[%s329 + $0x8] sm:$0xff]
        %v332 = vld [vmem:[%s329 + $0x30] sm:$0xff]
        %v333 = vld [vmem:[%s329 + $0x38] sm:$0xff]
        %s334 = scalar_lea.vmem %s219, 32 [#allocation2]
        %v335 = vld [vmem:[%s334] sm:$0xff]
        %v336 = vld [vmem:[%s334 + $0x8] sm:$0xff]
        %v337 = vld [vmem:[%s334 + $0x30] sm:$0xff]
        %v338 = vld [vmem:[%s334 + $0x38] sm:$0xff]
        %v339 = vadd.f32 %v297, %v330
        %v340 = vadd.f32 %v298, %v331
        %v341 = vadd.f32 %v299, %v332
        %v342 = vadd.f32 %v300, %v333
        %v343 = vadd.f32 %v301, %v335
        %v344 = vadd.f32 %v302, %v336
        %v345 = vadd.f32 %v303, %v337
        %v346 = vadd.f32 %v304, %v338
        %v347 = vmul.f32 %v330, %v330
        %v348 = vmul.f32 %v331, %v331
        %v349 = vmul.f32 %v332, %v332
        %v350 = vmul.f32 %v333, %v333
        %v351 = vadd.f32 %v309, %v347
        %v352 = vadd.f32 %v310, %v348
        %v353 = vadd.f32 %v311, %v349
        %v354 = vadd.f32 %v312, %v350
        %v355 = vmul.f32 %v335, %v335
        %v356 = vmul.f32 %v336, %v336
        %v357 = vmul.f32 %v337, %v337
        %v358 = vmul.f32 %v338, %v338
        %v359 = vadd.f32 %v317, %v355
        %v360 = vadd.f32 %v318, %v356
        %v361 = vadd.f32 %v319, %v357
        %v362 = vadd.f32 %v320, %v358
        %v363 = vmul.f32 %v330, %v335
        %v364 = vmul.f32 %v331, %v336
        %v365 = vmul.f32 %v332, %v337
        %v366 = vmul.f32 %v333, %v338
        %v367 = vadd.f32 %v325, %v363
        %v368 = vadd.f32 %v326, %v364
        %v369 = vadd.f32 %v327, %v365
        %v370 = vadd.f32 %v328, %v366
        %vm371 = vcmask 1047680
        %372 = vrot.lane.b32.xlu0 %v339, 16
        %v373 = vpop.permute.xlu0 %372
        %v374 = vsel %vm371, %v373, %v339
        %375 = vrot.lane.b32.xlu0 %v340, 16
        %v376 = vpop.permute.xlu0 %375
        %v377 = vsel %vm371, %v376, %v340
        %378 = vrot.lane.b32.xlu0 %v341, 16
        %v379 = vpop.permute.xlu0 %378
        %v380 = vsel %vm371, %v379, %v341
        %381 = vrot.lane.b32.xlu0 %v342, 16
        %v382 = vpop.permute.xlu0 %381
        %v383 = vsel %vm371, %v382, %v342
        %384 = vrot.lane.b32.xlu0 %v374, 16
        %v385 = vpop.permute.xlu0 %384
        %386 = vrot.lane.b32.xlu0 %v377, 16
        %v387 = vpop.permute.xlu0 %386
        %388 = vrot.lane.b32.xlu0 %v380, 16
        %v389 = vpop.permute.xlu0 %388
        %390 = vrot.lane.b32.xlu0 %v383, 16
        %v391 = vpop.permute.xlu0 %390
        %v392 = vsel %vm371, %v385, %v339
        %v393 = vsel %vm371, %v387, %v340
        %v394 = vsel %vm371, %v389, %v341
        %v395 = vsel %vm371, %v391, %v342
        %400 = vrot.lane.b32.xlu0 %v392, 113
        %v401 = vpop.permute.xlu0 %400
        %402 = vrot.lane.b32.xlu0 %v393, 113
        %v403 = vpop.permute.xlu0 %402
        %404 = vrot.lane.b32.xlu0 %v394, 113
        %v405 = vpop.permute.xlu0 %404
        %406 = vrot.lane.b32.xlu0 %v395, 113
        %v407 = vpop.permute.xlu0 %406
        %v412 = vsel %vm258, %v401, 0.0
        %v413 = vsel %vm258, %v403, 0.0
        %v414 = vsel %vm258, %v405, 0.0
        %v415 = vsel %vm258, %v407, 0.0
        %v416 = vadd.f32 %v339, %v412
        %v417 = vadd.f32 %v340, %v413
        %v418 = vadd.f32 %v341, %v414
        %v419 = vadd.f32 %v342, %v415
        %420 = vrot.lane.b32.xlu0 %v392, 127
        %v421 = vpop.permute.xlu0 %420
        %422 = vrot.lane.b32.xlu0 %v393, 127
        %v423 = vpop.permute.xlu0 %422
        %424 = vrot.lane.b32.xlu0 %v394, 127
        %v425 = vpop.permute.xlu0 %424
        %426 = vrot.lane.b32.xlu0 %v395, 127
        %v427 = vpop.permute.xlu0 %426
        %v432 = vsel %vm259, %v421, 0.0
        %v433 = vsel %vm259, %v423, 0.0
        %v434 = vsel %vm259, %v425, 0.0
        %v435 = vsel %vm259, %v427, 0.0
        %v436 = vadd.f32 %v416, %v432
        %v437 = vadd.f32 %v417, %v433
        %v438 = vadd.f32 %v418, %v434
        %v439 = vadd.f32 %v419, %v435
        %v440 = vrot.slane %v436, 7
        %v441 = vrot.slane %v438, 7
        %v442 = vrot.slane %v437, 7
        %v443 = vrot.slane %v439, 7
        %vm444 = vcmp.lt.s32.totalorder %v261, 1
        %v445 = vsel %vm444, %v440, %v442
        %v446 = vsel %vm444, %v441, %v443
        %v447 = vsel %vm444, %v442, %v440
        %v448 = vsel %vm444, %v443, %v441
        %v449 = vrot.slane %v436, 1
        %v450 = vrot.slane %v438, 1
        %v451 = vrot.slane %v437, 1
        %v452 = vrot.slane %v439, 1
        %vm453 = vcmp.lt.s32.totalorder %v261, 7
        %v454 = vsel %vm453, %v449, %v451
        %v455 = vsel %vm453, %v450, %v452
        %v456 = vsel %vm453, %v451, %v449
        %v457 = vsel %vm453, %v452, %v450
        %v458 = vsel %vm263, %v447, 0.0
        %v459 = vsel %vm264, %v445, 0.0
        %v460 = vsel %vm263, %v448, 0.0
        %v461 = vsel %vm264, %v446, 0.0
        %v462 = vadd.f32 %v436, %v458
        %v463 = vadd.f32 %v437, %v459
        %v464 = vadd.f32 %v438, %v460
        %v465 = vadd.f32 %v439, %v461
        %v466 = vsel %vm265, %v454, 0.0
        %v467 = vsel %vm266, %v456, 0.0
        %v468 = vsel %vm265, %v455, 0.0
        %v469 = vsel %vm266, %v457, 0.0
        %v470 = vadd.f32 %v462, %v466
        %v471 = vadd.f32 %v463, %v467
        %v472 = vadd.f32 %v464, %v468
        %v473 = vadd.f32 %v465, %v469
        %474 = vrot.lane.b32.xlu0 %v343, 16
        %v475 = vpop.permute.xlu0 %474
        %v476 = vsel %vm371, %v475, %v343
        %477 = vrot.lane.b32.xlu0 %v344, 16
        %v478 = vpop.permute.xlu0 %477
        %v479 = vsel %vm371, %v478, %v344
        %480 = vrot.lane.b32.xlu0 %v345, 16
        %v481 = vpop.permute.xlu0 %480
        %v482 = vsel %vm371, %v481, %v345
        %483 = vrot.lane.b32.xlu0 %v346, 16
        %v484 = vpop.permute.xlu0 %483
        %v485 = vsel %vm371, %v484, %v346
        %486 = vrot.lane.b32.xlu0 %v476, 16
        %v487 = vpop.permute.xlu0 %486
        %488 = vrot.lane.b32.xlu0 %v479, 16
        %v489 = vpop.permute.xlu0 %488
        %490 = vrot.lane.b32.xlu0 %v482, 16
        %v491 = vpop.permute.xlu0 %490
        %492 = vrot.lane.b32.xlu0 %v485, 16
        %v493 = vpop.permute.xlu0 %492
        %v494 = vsel %vm371, %v487, %v343
        %v495 = vsel %vm371, %v489, %v344
        %v496 = vsel %vm371, %v491, %v345
        %v497 = vsel %vm371, %v493, %v346
        %502 = vrot.lane.b32.xlu0 %v494, 113
        %v503 = vpop.permute.xlu0 %502
        %504 = vrot.lane.b32.xlu0 %v495, 113
        %v505 = vpop.permute.xlu0 %504
        %506 = vrot.lane.b32.xlu0 %v496, 113
        %v507 = vpop.permute.xlu0 %506
        %508 = vrot.lane.b32.xlu0 %v497, 113
        %v509 = vpop.permute.xlu0 %508
        %v514 = vsel %vm258, %v503, 0.0
        %v515 = vsel %vm258, %v505, 0.0
        %v516 = vsel %vm258, %v507, 0.0
        %v517 = vsel %vm258, %v509, 0.0
        %v518 = vadd.f32 %v343, %v514
        %v519 = vadd.f32 %v344, %v515
        %v520 = vadd.f32 %v345, %v516
        %v521 = vadd.f32 %v346, %v517
        %522 = vrot.lane.b32.xlu0 %v494, 127
        %v523 = vpop.permute.xlu0 %522
        %524 = vrot.lane.b32.xlu0 %v495, 127
        %v525 = vpop.permute.xlu0 %524
        %526 = vrot.lane.b32.xlu0 %v496, 127
        %v527 = vpop.permute.xlu0 %526
        %528 = vrot.lane.b32.xlu0 %v497, 127
        %v529 = vpop.permute.xlu0 %528
        %v534 = vsel %vm259, %v523, 0.0
        %v535 = vsel %vm259, %v525, 0.0
        %v536 = vsel %vm259, %v527, 0.0
        %v537 = vsel %vm259, %v529, 0.0
        %v538 = vadd.f32 %v518, %v534
        %v539 = vadd.f32 %v519, %v535
        %v540 = vadd.f32 %v520, %v536
        %v541 = vadd.f32 %v521, %v537
        %v542 = vrot.slane %v538, 7
        %v543 = vrot.slane %v540, 7
        %v544 = vrot.slane %v539, 7
        %v545 = vrot.slane %v541, 7
        %v546 = vsel %vm444, %v542, %v544
        %v547 = vsel %vm444, %v543, %v545
        %v548 = vsel %vm444, %v544, %v542
        %v549 = vsel %vm444, %v545, %v543
        %v550 = vrot.slane %v538, 1
        %v551 = vrot.slane %v540, 1
        %v552 = vrot.slane %v539, 1
        %v553 = vrot.slane %v541, 1
        %v554 = vsel %vm453, %v550, %v552
        %v555 = vsel %vm453, %v551, %v553
        %v556 = vsel %vm453, %v552, %v550
        %v557 = vsel %vm453, %v553, %v551
        %v558 = vsel %vm263, %v548, 0.0
        %v559 = vsel %vm264, %v546, 0.0
        %v560 = vsel %vm263, %v549, 0.0
        %v561 = vsel %vm264, %v547, 0.0
        %v562 = vadd.f32 %v538, %v558
        %v563 = vadd.f32 %v539, %v559
        %v564 = vadd.f32 %v540, %v560
        %v565 = vadd.f32 %v541, %v561
        %v566 = vsel %vm265, %v554, 0.0
        %v567 = vsel %vm266, %v556, 0.0
        %v568 = vsel %vm265, %v555, 0.0
        %v569 = vsel %vm266, %v557, 0.0
        %v570 = vadd.f32 %v562, %v566
        %v571 = vadd.f32 %v563, %v567
        %v572 = vadd.f32 %v564, %v568
        %v573 = vadd.f32 %v565, %v569
        %574 = vrot.lane.b32.xlu0 %v351, 16
        %v575 = vpop.permute.xlu0 %574
        %v576 = vsel %vm371, %v575, %v351
        %577 = vrot.lane.b32.xlu0 %v352, 16
        %v578 = vpop.permute.xlu0 %577
        %v579 = vsel %vm371, %v578, %v352
        %580 = vrot.lane.b32.xlu0 %v353, 16
        %v581 = vpop.permute.xlu0 %580
        %v582 = vsel %vm371, %v581, %v353
        %583 = vrot.lane.b32.xlu0 %v354, 16
        %v584 = vpop.permute.xlu0 %583
        %v585 = vsel %vm371, %v584, %v354
        %586 = vrot.lane.b32.xlu0 %v576, 16
        %v587 = vpop.permute.xlu0 %586
        %588 = vrot.lane.b32.xlu0 %v579, 16
        %v589 = vpop.permute.xlu0 %588
        %590 = vrot.lane.b32.xlu0 %v582, 16
        %v591 = vpop.permute.xlu0 %590
        %592 = vrot.lane.b32.xlu0 %v585, 16
        %v593 = vpop.permute.xlu0 %592
        %v594 = vsel %vm371, %v587, %v351
        %v595 = vsel %vm371, %v589, %v352
        %v596 = vsel %vm371, %v591, %v353
        %v597 = vsel %vm371, %v593, %v354
        %602 = vrot.lane.b32.xlu0 %v594, 113
        %v603 = vpop.permute.xlu0 %602
        %604 = vrot.lane.b32.xlu0 %v595, 113
        %v605 = vpop.permute.xlu0 %604
        %606 = vrot.lane.b32.xlu0 %v596, 113
        %v607 = vpop.permute.xlu0 %606
        %608 = vrot.lane.b32.xlu0 %v597, 113
        %v609 = vpop.permute.xlu0 %608
        %v614 = vsel %vm258, %v603, 0.0
        %v615 = vsel %vm258, %v605, 0.0
        %v616 = vsel %vm258, %v607, 0.0
        %v617 = vsel %vm258, %v609, 0.0
        %v618 = vadd.f32 %v351, %v614
        %v619 = vadd.f32 %v352, %v615
        %v620 = vadd.f32 %v353, %v616
        %v621 = vadd.f32 %v354, %v617
        %622 = vrot.lane.b32.xlu0 %v594, 127
        %v623 = vpop.permute.xlu0 %622
        %624 = vrot.lane.b32.xlu0 %v595, 127
        %v625 = vpop.permute.xlu0 %624
        %626 = vrot.lane.b32.xlu0 %v596, 127
        %v627 = vpop.permute.xlu0 %626
        %628 = vrot.lane.b32.xlu0 %v597, 127
        %v629 = vpop.permute.xlu0 %628
        %v634 = vsel %vm259, %v623, 0.0
        %v635 = vsel %vm259, %v625, 0.0
        %v636 = vsel %vm259, %v627, 0.0
        %v637 = vsel %vm259, %v629, 0.0
        %v638 = vadd.f32 %v618, %v634
        %v639 = vadd.f32 %v619, %v635
        %v640 = vadd.f32 %v620, %v636
        %v641 = vadd.f32 %v621, %v637
        %v642 = vrot.slane %v638, 7
        %v643 = vrot.slane %v640, 7
        %v644 = vrot.slane %v639, 7
        %v645 = vrot.slane %v641, 7
        %v646 = vsel %vm444, %v642, %v644
        %v647 = vsel %vm444, %v643, %v645
        %v648 = vsel %vm444, %v644, %v642
        %v649 = vsel %vm444, %v645, %v643
        %v650 = vrot.slane %v638, 1
        %v651 = vrot.slane %v640, 1
        %v652 = vrot.slane %v639, 1
        %v653 = vrot.slane %v641, 1
        %v654 = vsel %vm453, %v650, %v652
        %v655 = vsel %vm453, %v651, %v653
        %v656 = vsel %vm453, %v652, %v650
        %v657 = vsel %vm453, %v653, %v651
        %v658 = vsel %vm263, %v648, 0.0
        %v659 = vsel %vm264, %v646, 0.0
        %v660 = vsel %vm263, %v649, 0.0
        %v661 = vsel %vm264, %v647, 0.0
        %v662 = vadd.f32 %v638, %v658
        %v663 = vadd.f32 %v639, %v659
        %v664 = vadd.f32 %v640, %v660
        %v665 = vadd.f32 %v641, %v661
        %v666 = vsel %vm265, %v654, 0.0
        %v667 = vsel %vm266, %v656, 0.0
        %v668 = vsel %vm265, %v655, 0.0
        %v669 = vsel %vm266, %v657, 0.0
        %v670 = vadd.f32 %v662, %v666
        %v671 = vadd.f32 %v663, %v667
        %v672 = vadd.f32 %v664, %v668
        %v673 = vadd.f32 %v665, %v669
        %674 = vrot.lane.b32.xlu0 %v359, 16
        %v675 = vpop.permute.xlu0 %674
        %v676 = vsel %vm371, %v675, %v359
        %677 = vrot.lane.b32.xlu0 %v360, 16
        %v678 = vpop.permute.xlu0 %677
        %v679 = vsel %vm371, %v678, %v360
        %680 = vrot.lane.b32.xlu0 %v361, 16
        %v681 = vpop.permute.xlu0 %680
        %v682 = vsel %vm371, %v681, %v361
        %683 = vrot.lane.b32.xlu0 %v362, 16
        %v684 = vpop.permute.xlu0 %683
        %v685 = vsel %vm371, %v684, %v362
        %686 = vrot.lane.b32.xlu0 %v676, 16
        %v687 = vpop.permute.xlu0 %686
        %688 = vrot.lane.b32.xlu0 %v679, 16
        %v689 = vpop.permute.xlu0 %688
        %690 = vrot.lane.b32.xlu0 %v682, 16
        %v691 = vpop.permute.xlu0 %690
        %692 = vrot.lane.b32.xlu0 %v685, 16
        %v693 = vpop.permute.xlu0 %692
        %v694 = vsel %vm371, %v687, %v359
        %v695 = vsel %vm371, %v689, %v360
        %v696 = vsel %vm371, %v691, %v361
        %v697 = vsel %vm371, %v693, %v362
        %702 = vrot.lane.b32.xlu0 %v694, 113
        %v703 = vpop.permute.xlu0 %702
        %704 = vrot.lane.b32.xlu0 %v695, 113
        %v705 = vpop.permute.xlu0 %704
        %706 = vrot.lane.b32.xlu0 %v696, 113
        %v707 = vpop.permute.xlu0 %706
        %708 = vrot.lane.b32.xlu0 %v697, 113
        %v709 = vpop.permute.xlu0 %708
        %v714 = vsel %vm258, %v703, 0.0
        %v715 = vsel %vm258, %v705, 0.0
        %v716 = vsel %vm258, %v707, 0.0
        %v717 = vsel %vm258, %v709, 0.0
        %v718 = vadd.f32 %v359, %v714
        %v719 = vadd.f32 %v360, %v715
        %v720 = vadd.f32 %v361, %v716
        %v721 = vadd.f32 %v362, %v717
        %722 = vrot.lane.b32.xlu0 %v694, 127
        %v723 = vpop.permute.xlu0 %722
        %724 = vrot.lane.b32.xlu0 %v695, 127
        %v725 = vpop.permute.xlu0 %724
        %726 = vrot.lane.b32.xlu0 %v696, 127
        %v727 = vpop.permute.xlu0 %726
        %728 = vrot.lane.b32.xlu0 %v697, 127
        %v729 = vpop.permute.xlu0 %728
        %v734 = vsel %vm259, %v723, 0.0
        %v735 = vsel %vm259, %v725, 0.0
        %v736 = vsel %vm259, %v727, 0.0
        %v737 = vsel %vm259, %v729, 0.0
        %v738 = vadd.f32 %v718, %v734
        %v739 = vadd.f32 %v719, %v735
        %v740 = vadd.f32 %v720, %v736
        %v741 = vadd.f32 %v721, %v737
        %v742 = vrot.slane %v738, 7
        %v743 = vrot.slane %v740, 7
        %v744 = vrot.slane %v739, 7
        %v745 = vrot.slane %v741, 7
        %v746 = vsel %vm444, %v742, %v744
        %v747 = vsel %vm444, %v743, %v745
        %v748 = vsel %vm444, %v744, %v742
        %v749 = vsel %vm444, %v745, %v743
        %v750 = vrot.slane %v738, 1
        %v751 = vrot.slane %v740, 1
        %v752 = vrot.slane %v739, 1
        %v753 = vrot.slane %v741, 1
        %v754 = vsel %vm453, %v750, %v752
        %v755 = vsel %vm453, %v751, %v753
        %v756 = vsel %vm453, %v752, %v750
        %v757 = vsel %vm453, %v753, %v751
        %v758 = vsel %vm263, %v748, 0.0
        %v759 = vsel %vm264, %v746, 0.0
        %v760 = vsel %vm263, %v749, 0.0
        %v761 = vsel %vm264, %v747, 0.0
        %v762 = vadd.f32 %v738, %v758
        %v763 = vadd.f32 %v739, %v759
        %v764 = vadd.f32 %v740, %v760
        %v765 = vadd.f32 %v741, %v761
        %v766 = vsel %vm265, %v754, 0.0
        %v767 = vsel %vm266, %v756, 0.0
        %v768 = vsel %vm265, %v755, 0.0
        %v769 = vsel %vm266, %v757, 0.0
        %v770 = vadd.f32 %v762, %v766
        %v771 = vadd.f32 %v763, %v767
        %v772 = vadd.f32 %v764, %v768
        %v773 = vadd.f32 %v765, %v769
        %774 = vrot.lane.b32.xlu0 %v367, 16
        %v775 = vpop.permute.xlu0 %774
        %v776 = vsel %vm371, %v775, %v367
        %777 = vrot.lane.b32.xlu0 %v368, 16
        %v778 = vpop.permute.xlu0 %777
        %v779 = vsel %vm371, %v778, %v368
        %780 = vrot.lane.b32.xlu0 %v369, 16
        %v781 = vpop.permute.xlu0 %780
        %v782 = vsel %vm371, %v781, %v369
        %783 = vrot.lane.b32.xlu0 %v370, 16
        %v784 = vpop.permute.xlu0 %783
        %v785 = vsel %vm371, %v784, %v370
        %786 = vrot.lane.b32.xlu0 %v776, 16
        %v787 = vpop.permute.xlu0 %786
        %788 = vrot.lane.b32.xlu0 %v779, 16
        %v789 = vpop.permute.xlu0 %788
        %790 = vrot.lane.b32.xlu0 %v782, 16
        %v791 = vpop.permute.xlu0 %790
        %792 = vrot.lane.b32.xlu0 %v785, 16
        %v793 = vpop.permute.xlu0 %792
        %v794 = vsel %vm371, %v787, %v367
        %v795 = vsel %vm371, %v789, %v368
        %v796 = vsel %vm371, %v791, %v369
        %v797 = vsel %vm371, %v793, %v370
        %802 = vrot.lane.b32.xlu0 %v794, 113
        %v803 = vpop.permute.xlu0 %802
        %804 = vrot.lane.b32.xlu0 %v795, 113
        %v805 = vpop.permute.xlu0 %804
        %806 = vrot.lane.b32.xlu0 %v796, 113
        %v807 = vpop.permute.xlu0 %806
        %808 = vrot.lane.b32.xlu0 %v797, 113
        %v809 = vpop.permute.xlu0 %808
        %v814 = vsel %vm258, %v803, 0.0
        %v815 = vsel %vm258, %v805, 0.0
        %v816 = vsel %vm258, %v807, 0.0
        %v817 = vsel %vm258, %v809, 0.0
        %v818 = vadd.f32 %v367, %v814
        %v819 = vadd.f32 %v368, %v815
        %v820 = vadd.f32 %v369, %v816
        %v821 = vadd.f32 %v370, %v817
        %822 = vrot.lane.b32.xlu0 %v794, 127
        %v823 = vpop.permute.xlu0 %822
        %824 = vrot.lane.b32.xlu0 %v795, 127
        %v825 = vpop.permute.xlu0 %824
        %826 = vrot.lane.b32.xlu0 %v796, 127
        %v827 = vpop.permute.xlu0 %826
        %828 = vrot.lane.b32.xlu0 %v797, 127
        %v829 = vpop.permute.xlu0 %828
        %v834 = vsel %vm259, %v823, 0.0
        %v835 = vsel %vm259, %v825, 0.0
        %v836 = vsel %vm259, %v827, 0.0
        %v837 = vsel %vm259, %v829, 0.0
        %v838 = vadd.f32 %v818, %v834
        %v839 = vadd.f32 %v819, %v835
        %v840 = vadd.f32 %v820, %v836
        %v841 = vadd.f32 %v821, %v837
        %v842 = vrot.slane %v838, 7
        %v843 = vrot.slane %v840, 7
        %v844 = vrot.slane %v839, 7
        %v845 = vrot.slane %v841, 7
        %v846 = vsel %vm444, %v842, %v844
        %v847 = vsel %vm444, %v843, %v845
        %v848 = vsel %vm444, %v844, %v842
        %v849 = vsel %vm444, %v845, %v843
        %v850 = vrot.slane %v838, 1
        %v851 = vrot.slane %v840, 1
        %v852 = vrot.slane %v839, 1
        %v853 = vrot.slane %v841, 1
        %v854 = vsel %vm453, %v850, %v852
        %v855 = vsel %vm453, %v851, %v853
        %v856 = vsel %vm453, %v852, %v850
        %v857 = vsel %vm453, %v853, %v851
        %v858 = vsel %vm263, %v848, 0.0
        %v859 = vsel %vm264, %v846, 0.0
        %v860 = vsel %vm263, %v849, 0.0
        %v861 = vsel %vm264, %v847, 0.0
        %v862 = vadd.f32 %v838, %v858
        %v863 = vadd.f32 %v839, %v859
        %v864 = vadd.f32 %v840, %v860
        %v865 = vadd.f32 %v841, %v861
        %v866 = vsel %vm265, %v854, 0.0
        %v867 = vsel %vm266, %v856, 0.0
        %v868 = vsel %vm265, %v855, 0.0
        %v869 = vsel %vm266, %v857, 0.0
        %v870 = vadd.f32 %v862, %v866
        %v871 = vadd.f32 %v863, %v867
        %v872 = vadd.f32 %v864, %v868
        %v873 = vadd.f32 %v865, %v869
        %v874 = vmul.f32 %v470, 0.037037037
        %v875 = vmul.f32 %v471, 0.037037037
        %v876 = vmul.f32 %v472, 0.037037037
        %v877 = vmul.f32 %v473, 0.037037037
        %v878 = vmul.f32 %v570, 0.037037037
        %v879 = vmul.f32 %v571, 0.037037037
        %v880 = vmul.f32 %v572, 0.037037037
        %v881 = vmul.f32 %v573, 0.037037037
        %v882 = vmul.f32 %v874, 27.0
        %v883 = vmul.f32 %v875, 27.0
        %v884 = vmul.f32 %v876, 27.0
        %v885 = vmul.f32 %v877, 27.0
        %v886 = vmul.f32 %v882, %v874
        %v887 = vmul.f32 %v883, %v875
        %v888 = vmul.f32 %v884, %v876
        %v889 = vmul.f32 %v885, %v877
        %v890 = vsub.f32 %v670, %v886
        %v891 = vsub.f32 %v671, %v887
        %v892 = vsub.f32 %v672, %v888
        %v893 = vsub.f32 %v673, %v889
        %v894 = vmul.f32 %v890, 0.03846154
        %v895 = vmul.f32 %v891, 0.03846154
        %v896 = vmul.f32 %v892, 0.03846154
        %v897 = vmul.f32 %v893, 0.03846154
        %v898 = vmul.f32 %v878, 27.0
        %v899 = vmul.f32 %v879, 27.0
        %v900 = vmul.f32 %v880, 27.0
        %v901 = vmul.f32 %v881, 27.0
        %v902 = vmul.f32 %v898, %v878
        %v903 = vmul.f32 %v899, %v879
        %v904 = vmul.f32 %v900, %v880
        %v905 = vmul.f32 %v901, %v881
        %v906 = vsub.f32 %v770, %v902
        %v907 = vsub.f32 %v771, %v903
        %v908 = vsub.f32 %v772, %v904
        %v909 = vsub.f32 %v773, %v905
        %v910 = vmul.f32 %v906, 0.03846154
        %v911 = vmul.f32 %v907, 0.03846154
        %v912 = vmul.f32 %v908, 0.03846154
        %v913 = vmul.f32 %v909, 0.03846154
        %v914 = vmul.f32 %v870, 0.037037037
        %v915 = vmul.f32 %v871, 0.037037037
        %v916 = vmul.f32 %v872, 0.037037037
        %v917 = vmul.f32 %v873, 0.037037037
        %v918 = vmul.f32 %v874, %v878
        %v919 = vmul.f32 %v875, %v879
        %v920 = vmul.f32 %v876, %v880
        %v921 = vmul.f32 %v877, %v881
        %v922 = vsub.f32 %v914, %v918
        %v923 = vsub.f32 %v915, %v919
        %v924 = vsub.f32 %v916, %v920
        %v925 = vsub.f32 %v917, %v921
        %v926 = vmul.f32 %v874, 2.0
        %v927 = vmul.f32 %v875, 2.0
        %v928 = vmul.f32 %v876, 2.0
        %v929 = vmul.f32 %v877, 2.0
        %v930 = vmul.f32 %v926, %v878
        %v931 = vmul.f32 %v927, %v879
        %v932 = vmul.f32 %v928, %v880
        %v933 = vmul.f32 %v929, %v881
        %v934 = vadd.f32 %v930, 0.0001
        %v935 = vadd.f32 %v931, 0.0001
        %v936 = vadd.f32 %v932, 0.0001
        %v937 = vadd.f32 %v933, 0.0001
        %v938 = vmul.f32 %v922, 2.0
        %v939 = vmul.f32 %v923, 2.0
        %v940 = vmul.f32 %v924, 2.0
        %v941 = vmul.f32 %v925, 2.0
        %v942 = vadd.f32 %v938, 0.0009
        %v943 = vadd.f32 %v939, 0.0009
        %v944 = vadd.f32 %v940, 0.0009
        %v945 = vadd.f32 %v941, 0.0009
        %v946 = vmul.f32 %v934, %v942
        %v947 = vmul.f32 %v935, %v943
        %v948 = vmul.f32 %v936, %v944
        %v949 = vmul.f32 %v937, %v945
        %v950 = vmul.f32 %v874, %v874
        %v951 = vmul.f32 %v875, %v875
        %v952 = vmul.f32 %v876, %v876
        %v953 = vmul.f32 %v877, %v877
        %v954 = vmul.f32 %v878, %v878
        %v955 = vmul.f32 %v879, %v879
        %v956 = vmul.f32 %v880, %v880
        %v957 = vmul.f32 %v881, %v881
        %v958 = vadd.f32 %v950, %v954
        %v959 = vadd.f32 %v951, %v955
        %v960 = vadd.f32 %v952, %v956
        %v961 = vadd.f32 %v953, %v957
        %v962 = vadd.f32 %v958, 0.0001
        %v963 = vadd.f32 %v959, 0.0001
        %v964 = vadd.f32 %v960, 0.0001
        %v965 = vadd.f32 %v961, 0.0001
        %v966 = vadd.f32 %v910, %v894
        %v967 = vadd.f32 %v911, %v895
        %v968 = vadd.f32 %v912, %v896
        %v969 = vadd.f32 %v913, %v897
        %v970 = vadd.f32 %v966, 0.0009
        %v971 = vadd.f32 %v967, 0.0009
        %v972 = vadd.f32 %v968, 0.0009
        %v973 = vadd.f32 %v969, 0.0009
        %v974 = vmul.f32 %v962, %v970
        %v975 = vmul.f32 %v963, %v971
        %v976 = vmul.f32 %v964, %v972
        %v977 = vmul.f32 %v965, %v973
        %v978 = vrcp.pop %v974
        %v979 = vrcp.pop %v975
        %v980 = vrcp.pop %v976
        %v981 = vrcp.pop %v977
        %v982 = vmul.f32 %v946, %v978
        %v983 = vmul.f32 %v947, %v979
        %v984 = vmul.f32 %v948, %v980
        %v985 = vmul.f32 %v949, %v981
        %v986 = vsub.f32 1.0, %v982
        %v987 = vsub.f32 1.0, %v983
        %v988 = vsub.f32 1.0, %v984
        %v989 = vsub.f32 1.0, %v985
        %v990 = vmul.f32 %v986, 0.5
        %v991 = vmul.f32 %v987, 0.5
        %v992 = vmul.f32 %v988, 0.5
        %v993 = vmul.f32 %v989, 0.5
        %vm994 = vcmask 130048
        %v995 = vsel %vm994, %v990, 0.0
        %v996 = vsel %vm994, %v991, 0.0
        %v997 = vadd.f32 %v995, %v996
        %v998 = vsel %vm994, %v992, 0.0
        %v999 = vadd.f32 %v997, %v998
        %v1000 = vsel %vm994, %v993, 0.0
        %v1001 = vadd.f32 %v999, %v1000
        %v1002 = vrot.slane %v1001, 4
        %v1003 = vadd.f32 %v1001, %v1002
        %v1004 = vrot.slane %v1003, 2
        %v1005 = vadd.f32 %v1003, %v1004
        %v1006 = vrot.slane %v1005, 1
        %v1007 = vadd.f32 %v1005, %v1006
        %v1008 = vsel %vm994, %v1007, 0.0
        %1009 = vadd.xlane.f32.xlu0 %v1008
        %v1010 = vpop.xlane.xlu0 %1009
        %s1011 = vtos %v1010
        %v1012 = vstv %s1011
        %1013 = vst [vmem:[%s253] sm:$0xff] %v1012
        %s1014 = sand.u32 %s82, 1
        %s1015 = scalar_lea.sflag [#allocation4], %s1014
        %s1016 = sand.u32 %s82, 1
        %s1017 = smul.addr %s1016, 8
        %s1018 = scalar_lea.vmem [#allocation7], %s1017
        // Predicated region
        $region37: #{tpu_custom_call.1} parent=27 // pred_check
          %p1019 = pneg %p92
        $region38: #{tpu_custom_call.1} parent=27 // pred_check_branch
          %1021 = sbr.rel (%p1019) target = $region40
        $region39: #{tpu_custom_call.1} parent=27 // pred_region
          %s1023 = ssub.s32 128, 128
          %1024 = vsyncadd %s1015, %s1023
          %s1025 = smul.addr %s22, 128
          %s1026 = scalar_lea.hbm %s2, %s1025
          %s1028 = sshll.u32 %s1018, 4
          %s1029 = int_to_ptr.vmem [resolvable:$true] %s1028
          %1031 = dma.vmem_to_hbm [thread:$0]  %s1029, 128, %s1026, %s1015
        $region40: #{tpu_custom_call.1} parent=27 // pred_fallthru
          _
      $region28: #{tpu_custom_call.1} parent=5 // pred_fallthru
        _
      %p1032 = scmp.le.s32.totalorder 2, %s17
      // Predicated region
      $region41: #{tpu_custom_call.1} parent=5 // pred_check
        %p1033 = pneg %p1032
      $region42: #{tpu_custom_call.1} parent=5 // pred_check_branch
        %1035 = sbr.rel (%p1033) target = $region44
      $region43: #{tpu_custom_call.1} parent=5 // pred_region
        %s1036 = ssub.s32 %s17, 2
        // Predicated region
        $region45: #{tpu_custom_call.1} parent=43 // pred_check
          %p1037 = pneg %p98
        $region46: #{tpu_custom_call.1} parent=43 // pred_check_branch
          %1039 = sbr.rel (%p1037) target = $region48
        $region47: #{tpu_custom_call.1} parent=43 // pred_region
          %s1040 = sand.u32 %s83, 1
          %s1041 = scalar_lea.sflag [#allocation4], %s1040
          %s1042 = sand.u32 %s83, 1
          %s1043 = smul.addr %s1042, 8
          %s1044 = scalar_lea.vmem [#allocation7], %s1043
          %1045 = dma.done %s1041, 128
        $region48: #{tpu_custom_call.1} parent=43 // pred_fallthru
          _
      $region44: #{tpu_custom_call.1} parent=5 // pred_fallthru
        _
    $region6: #{tpu_custom_call.1} parent=1 // loop_footer
      %s21 = sadd.s32 1, %s17
    $region7: #{tpu_custom_call.1} parent=1 // loop_footer_branch
      %16 = sbr.rel target = $region3
    $region8: #{tpu_custom_call.1} parent=1 // loop_exit
      _
    %1046 = vsyncpa [#allocation3], 1
    %s1047 = scalar_lea.sflag [#allocation3], 1
    %1048 = vsyncpa %s1047, 1
    %1049 = vsyncpa [#allocation6], 1
    %s1050 = scalar_lea.sflag [#allocation6], 1
    %1051 = vsyncpa %s1050, 1
    %1052 = vsyncpa [#allocation4], 1
    %s1053 = scalar_lea.sflag [#allocation4], 1
    %1054 = vsyncpa %s1053, 1

// kernel: tpu_custom_call.1
$region0: #{tpu_custom_call.1}
  #allocation0 [shape = 'u32[]', space=smem, size = 0x4, offset = 0x4, fixed_abs, tag = 'smem constant byte address 0x4 - core index']
  #allocation1 [shape = 'u32[144,128]{1,0:T(1,128)}', space=vmem, size = 0x12000, scoped, tag = 'internal scratch']
  #allocation8 [shape = 's32[]', space=sflag, size = 0x4, offset = 0, fixed_abs, tag = 'sflag constant byte address 0x0 - dummy sync flag']
  #allocation10 [shape = 's32[]', space=sflag, size = 0x4, offset = 0, fixed_abs, tag = 'sflag constant byte address 0x0 - dummy sync flag']
  %s0 = inlined_call_operand.hbm [shape: f32[4,4,16,16], index: 0, kind: input, shape index: {}]
  %s1 = inlined_call_operand.hbm [shape: f32[4,4,16,16], index: 1, kind: input, shape index: {}]
  %s2 = inlined_call_operand.hbm [shape: f32[2,8,128], index: 2, kind: output, shape index: {}]
  %s3 = sld [smem:[#allocation0]]
  $region49: #{tpu_custom_call.1} parent=0
    _
  %s5 = ssub.s32 1, %s3
  %s6 = scalar_select 0, %s5, %s3
  $region1: #{tpu_custom_call.1} parent=0
    #allocation2 [shape = 'u8[98304]{0}', space=vmem, size = 0x18000, scoped, tag = 'input window, operand 0']
    #allocation3 [shape = 's32[2]{0}', space=sflag, size = 0x8, scoped, tag = 'scoped memory for tpu_custom_call.1']
    #allocation4 [shape = 's32[2]{0}', space=sflag, size = 0x8, scoped, tag = 'scoped memory for tpu_custom_call.1']
    #allocation5 [shape = 'u8[98304]{0}', space=vmem, size = 0x18000, scoped, tag = 'input window, operand 1']
    #allocation6 [shape = 's32[2]{0}', space=sflag, size = 0x8, scoped, tag = 'scoped memory for tpu_custom_call.1']
    #allocation7 [shape = 'u8[8192]{0}', space=vmem, size = 0x2000, scoped, tag = 'output window, operand 0']
    %7 = vsyncpa [#allocation3], 0
    %s8 = scalar_lea.sflag [#allocation3], 1
    %9 = vsyncpa %s8, 0
    %10 = vsyncpa [#allocation6], 0
    %s11 = scalar_lea.sflag [#allocation6], 1
    %12 = vsyncpa %s11, 0
    %13 = vsyncpa [#allocation4], 0
    %s14 = scalar_lea.sflag [#allocation4], 1
    %15 = vsyncpa %s14, 0
    loop: start=0, step=1, limit=4
    $region2: #{tpu_custom_call.1} parent=1 // loop_pre_header
      _
    $region3: #{tpu_custom_call.1} parent=1 // loop_header
      %s17 = sphi 0, %s21
      %p18 = scmp.ge.s32.totalorder %s17, 4
      %s27 = sphi 0, %s29
      %s30 = sphi 0, %s27
      %s31 = sphi 0, %s30
      %s47 = sphi 0, %s31
      %s53 = sphi 0, %s55
      %s56 = sphi 0, %s53
      %s57 = sphi 0, %s56
      %s73 = sphi 0, %s57
      %s79 = sphi 0, %s81
      %s82 = sphi 0, %s79
      %s83 = sphi 0, %s82
      %s99 = sphi 0, %s83
    $region4: #{tpu_custom_call.1} parent=1 // loop_header_branch
      %20 = sbr.rel (%p18) target = $region8
    $region5: #{tpu_custom_call.1} parent=1 // loop_body
      %s22 = ssub.s32 %s17, 1
      %s23 = ssub.s32 %s17, 2
      %s24 = sadd.s32 %s17, 1
      %s25 = ssub.s32 %s17, %s24
      %p26 = scmp.eq.s32.totalorder %s25, 0
      %s28 = sadd.s32 %s27, 1
      %s29 = scalar_select %p26, %s27, %s28
      %p32 = pneg %p26
      %p33 = scmp.eq.s32.totalorder %s17, 1
      %p34 = por %p32, %p33
      %p35 = scmp.ne.s32.totalorder %s27, %s30
      %p36 = scmp.eq.s32.totalorder %s17, 0
      %p37 = por %p35, %p36
      %p38 = scmp.ne.s32.totalorder %s27, %s30
      %p39 = scmp.eq.s32.totalorder %s22, 1
      %p40 = por %p38, %p39
      %p41 = scmp.ne.s32.totalorder %s30, %s31
      %p42 = scmp.eq.s32.totalorder %s22, 0
      %p43 = por %p41, %p42
      %p44 = scmp.ne.s32.totalorder %s30, %s31
      %p45 = scmp.eq.s32.totalorder %s23, 1
      %p46 = por %p44, %p45
      %p48 = scmp.ne.s32.totalorder %s31, %s47
      %p49 = scmp.eq.s32.totalorder %s23, 0
      %p50 = por %p48, %p49
      %s51 = ssub.s32 %s17, %s24
      %p52 = scmp.eq.s32.totalorder %s51, 0
      %s54 = sadd.s32 %s53, 1
      %s55 = scalar_select %p52, %s53, %s54
      %p58 = pneg %p52
      %p59 = scmp.eq.s32.totalorder %s17, 1
      %p60 = por %p58, %p59
      %p61 = scmp.ne.s32.totalorder %s53, %s56
      %p62 = scmp.eq.s32.totalorder %s17, 0
      %p63 = por %p61, %p62
      %p64 = scmp.ne.s32.totalorder %s53, %s56
      %p65 = scmp.eq.s32.totalorder %s22, 1
      %p66 = por %p64, %p65
      %p67 = scmp.ne.s32.totalorder %s56, %s57
      %p68 = scmp.eq.s32.totalorder %s22, 0
      %p69 = por %p67, %p68
      %p70 = scmp.ne.s32.totalorder %s56, %s57
      %p71 = scmp.eq.s32.totalorder %s23, 1
      %p72 = por %p70, %p71
      %p74 = scmp.ne.s32.totalorder %s57, %s73
      %p75 = scmp.eq.s32.totalorder %s23, 0
      %p76 = por %p74, %p75
      %s77 = ssub.s32 %s17, %s24
      %p78 = scmp.eq.s32.totalorder %s77, 0
      %s80 = sadd.s32 %s79, 1
      %s81 = scalar_select %p78, %s79, %s80
      %p84 = pneg %p78
      %p85 = scmp.eq.s32.totalorder %s17, 1
      %p86 = por %p84, %p85
      %p87 = scmp.ne.s32.totalorder %s79, %s82
      %p88 = scmp.eq.s32.totalorder %s17, 0
      %p89 = por %p87, %p88
      %p90 = scmp.ne.s32.totalorder %s79, %s82
      %p91 = scmp.eq.s32.totalorder %s22, 1
      %p92 = por %p90, %p91
      %p93 = scmp.ne.s32.totalorder %s82, %s83
      %p94 = scmp.eq.s32.totalorder %s22, 0
      %p95 = por %p93, %p94
      %p96 = scmp.ne.s32.totalorder %s82, %s83
      %p97 = scmp.eq.s32.totalorder %s23, 1
      %p98 = por %p96, %p97
      %p100 = scmp.ne.s32.totalorder %s83, %s99
      %p101 = scmp.eq.s32.totalorder %s23, 0
      %p102 = por %p100, %p101
      %p103 = scmp.le.s32.totalorder 1, %s17
      %p104 = scmp.lt.s32.totalorder %s17, 3
      %p105 = pnand %p103, %p104
      %p106 = pneg %p105
      // Predicated region
      $region9: #{tpu_custom_call.1} parent=5 // pred_check
        _
      $region10: #{tpu_custom_call.1} parent=5 // pred_check_branch
        %108 = sbr.rel (%p105) target = $region12
      $region11: #{tpu_custom_call.1} parent=5 // pred_region
        %s109 = ssub.s32 %s17, 1
      $region12: #{tpu_custom_call.1} parent=5 // pred_fallthru
        _
      %p110 = scmp.lt.s32.totalorder %s17, 2
      // Predicated region
      $region13: #{tpu_custom_call.1} parent=5 // pred_check
        %p111 = pneg %p110
      $region14: #{tpu_custom_call.1} parent=5 // pred_check_branch
        %113 = sbr.rel (%p111) target = $region16
      $region15: #{tpu_custom_call.1} parent=5 // pred_region
        // Predicated region
        $region17: #{tpu_custom_call.1} parent=15 // pred_check
          %p114 = pneg %p37
        $region18: #{tpu_custom_call.1} parent=15 // pred_check_branch
          %116 = sbr.rel (%p114) target = $region20
        $region19: #{tpu_custom_call.1} parent=15 // pred_region
          #allocation9 [shape = 'u32[6]{0}', space=smem, size = 0x18, scoped, tag = 'DMA stride descriptor']
          %s117 = sand.u32 %s27, 1
          %s118 = scalar_lea.sflag [#allocation3], %s117
          %s119 = sand.u32 %s27, 1
          %s120 = smul.addr %s119, 96
          %s121 = scalar_lea.vmem [#allocation2], %s120
          %s122 = smul.u32 2, %s17
          %s124 = ssub.s32 1536, 1536
          %125 = vsyncadd %s118, %s124
          %s126 = smul.addr %s122, 8
          %s127 = smul.addr %s126, 128
          %s128 = scalar_lea.hbm %s0, %s127
          %s130 = sshll.u32 1, 14
          %s131 = sxor.u32 4294967295, %s130
          %s133 = sld [smem:[#allocation0]]
          %s134 = sadd.s32 2, %s133
          %s136 = sshll.u32 7, 26
          %s137 = sxor.u32 4294967295, %s136
          %s138 = sand.u32 0, %s137
          %s139 = sshll.u32 %s134, 26
          %s140 = sor.u32 %s138, %s139
          %s141 = sshll.u32 %s121, 4
          %s142 = int_to_ptr.vmem [resolvable:$true] %s141
          %148 = sst [smem:[#allocation9]] 1024
          %s149 = scalar_lea.smem [#allocation9], 1
          %150 = sst [smem:[%s149]] 768
          %s151 = scalar_lea.smem [#allocation9], 2
          %152 = sst [smem:[%s151]] 6
          %s153 = scalar_lea.smem [#allocation9], 3
          %154 = sst [smem:[%s153]] 128
          %s155 = scalar_lea.smem [#allocation9], 4
          %156 = sst [smem:[%s155]] 128
          %s157 = scalar_lea.smem [#allocation9], 5
          %158 = sst [smem:[%s157]] 8
          %160 = dma.general %s128, 1536, %s142, %s118, [#allocation8], [#allocation9], %s140, 0
        $region20: #{tpu_custom_call.1} parent=15 // pred_fallthru
          _
        // Predicated region
        $region21: #{tpu_custom_call.1} parent=15 // pred_check
          %p161 = pneg %p63
        $region22: #{tpu_custom_call.1} parent=15 // pred_check_branch
          %163 = sbr.rel (%p161) target = $region24
        $region23: #{tpu_custom_call.1} parent=15 // pred_region
          #allocation11 [shape = 'u32[6]{0}', space=smem, size = 0x18, scoped, tag = 'DMA stride descriptor']
          %s164 = sand.u32 %s53, 1
          %s165 = scalar_lea.sflag [#allocation6], %s164
          %s166 = sand.u32 %s53, 1
          %s167 = smul.addr %s166, 96
          %s168 = scalar_lea.vmem [#allocation5], %s167
          %s169 = smul.u32 2, %s17
          %s171 = ssub.s32 1536, 1536
          %172 = vsyncadd %s165, %s171
          %s173 = smul.addr %s169, 8
          %s174 = smul.addr %s173, 128
          %s175 = scalar_lea.hbm %s1, %s174
          %s177 = sshll.u32 1, 14
          %s178 = sxor.u32 4294967295, %s177
          %s180 = sld [smem:[#allocation0]]
          %s181 = sadd.s32 2, %s180
          %s183 = sshll.u32 7, 26
          %s184 = sxor.u32 4294967295, %s183
          %s185 = sand.u32 0, %s184
          %s186 = sshll.u32 %s181, 26
          %s187 = sor.u32 %s185, %s186
          %s188 = sshll.u32 %s168, 4
          %s189 = int_to_ptr.vmem [resolvable:$true] %s188
          %195 = sst [smem:[#allocation11]] 1024
          %s196 = scalar_lea.smem [#allocation11], 1
          %197 = sst [smem:[%s196]] 768
          %s198 = scalar_lea.smem [#allocation11], 2
          %199 = sst [smem:[%s198]] 6
          %s200 = scalar_lea.smem [#allocation11], 3
          %201 = sst [smem:[%s200]] 128
          %s202 = scalar_lea.smem [#allocation11], 4
          %203 = sst [smem:[%s202]] 128
          %s204 = scalar_lea.smem [#allocation11], 5
          %205 = sst [smem:[%s204]] 8
          %207 = dma.general %s175, 1536, %s189, %s165, [#allocation10], [#allocation11], %s187, 0
        $region24: #{tpu_custom_call.1} parent=15 // pred_fallthru
          _
      $region16: #{tpu_custom_call.1} parent=5 // pred_fallthru
        _
      %p208 = scmp.le.s32.totalorder 1, %s17
      %p209 = scmp.lt.s32.totalorder %s17, 3
      %p210 = pnand %p208, %p209
      %p211 = pneg %p210
      // Predicated region
      $region25: #{tpu_custom_call.1} parent=5 // pred_check
        _
      $region26: #{tpu_custom_call.1} parent=5 // pred_check_branch
        %213 = sbr.rel (%p210) target = $region28
      $region27: #{tpu_custom_call.1} parent=5 // pred_region
        %s214 = ssub.s32 %s17, 1
        %s215 = sand.u32 %s30, 1
        %s216 = scalar_lea.sflag [#allocation3], %s215
        %s217 = sand.u32 %s30, 1
        %s218 = smul.addr %s217, 96
        %s219 = scalar_lea.vmem [#allocation2], %s218
        // Predicated region
        $region29: #{tpu_custom_call.1} parent=27 // pred_check
          %p220 = pneg %p43
        $region30: #{tpu_custom_call.1} parent=27 // pred_check_branch
          %222 = sbr.rel (%p220) target = $region32
        $region31: #{tpu_custom_call.1} parent=27 // pred_region
          %223 = dma.done %s216, 1536
        $region32: #{tpu_custom_call.1} parent=27 // pred_fallthru
          _
        %s224 = sand.u32 %s56, 1
        %s225 = scalar_lea.sflag [#allocation6], %s224
        %s226 = sand.u32 %s56, 1
        %s227 = smul.addr %s226, 96
        %s228 = scalar_lea.vmem [#allocation5], %s227
        // Predicated region
        $region33: #{tpu_custom_call.1} parent=27 // pred_check
          %p229 = pneg %p69
        $region34: #{tpu_custom_call.1} parent=27 // pred_check_branch
          %231 = sbr.rel (%p229) target = $region36
        $region35: #{tpu_custom_call.1} parent=27 // pred_region
          %232 = dma.done %s225, 1536
        $region36: #{tpu_custom_call.1} parent=27 // pred_fallthru
          _
        %s233 = sand.u32 %s30, 1
        %s234 = scalar_lea.sflag [#allocation3], %s233
        %s235 = sand.u32 %s30, 1
        %s236 = smul.addr %s235, 96
        %s237 = scalar_lea.vmem [#allocation2], %s236
        %p238 = pneg %p43
        %p239 = pneg %p40
        %s240 = sand.u32 %s56, 1
        %s241 = scalar_lea.sflag [#allocation6], %s240
        %s242 = sand.u32 %s56, 1
        %s243 = smul.addr %s242, 96
        %s244 = scalar_lea.vmem [#allocation5], %s243
        %p245 = pneg %p69
        %p246 = pneg %p66
        %p247 = pneg %p95
        %p248 = pneg %p92
        %s249 = sand.u32 %s82, 1
        %s250 = scalar_lea.sflag [#allocation4], %s249
        %s251 = sand.u32 %s82, 1
        %s252 = smul.addr %s251, 8
        %s253 = scalar_lea.vmem [#allocation7], %s252
        %s254 = smul.u32 2, %s22
        %s255 = smul.u32 2, %s22
        %v256 = vld [vmem:[%s228] sm:$0xff]
        %v257 = vld [vmem:[%s228 + $0x8] sm:$0xff]
        %v258 = vld [vmem:[%s228 + $0x30] sm:$0xff]
        %v259 = vld [vmem:[%s228 + $0x38] sm:$0xff]
        %v260 = vld [vmem:[%s219] sm:$0xff]
        %v261 = vld [vmem:[%s219 + $0x8] sm:$0xff]
        %v262 = vld [vmem:[%s219 + $0x30] sm:$0xff]
        %v263 = vld [vmem:[%s219 + $0x38] sm:$0xff]
        %v264 = vmul.f32 %v256, %v256
        %v265 = vmul.f32 %v257, %v257
        %v266 = vmul.f32 %v258, %v258
        %v267 = vmul.f32 %v259, %v259
        %v268 = vmul.f32 %v260, %v260
        %v269 = vmul.f32 %v261, %v261
        %v270 = vmul.f32 %v262, %v262
        %v271 = vmul.f32 %v263, %v263
        %v272 = vmul.f32 %v256, %v260
        %v273 = vmul.f32 %v257, %v261
        %v274 = vmul.f32 %v258, %v262
        %v275 = vmul.f32 %v259, %v263
        %s276 = scalar_lea.vmem %s228, 16 [#allocation5]
        %v277 = vld [vmem:[%s276] sm:$0xff]
        %v278 = vld [vmem:[%s276 + $0x8] sm:$0xff]
        %v279 = vld [vmem:[%s276 + $0x30] sm:$0xff]
        %v280 = vld [vmem:[%s276 + $0x38] sm:$0xff]
        %s281 = scalar_lea.vmem %s219, 16 [#allocation2]
        %v282 = vld [vmem:[%s281] sm:$0xff]
        %v283 = vld [vmem:[%s281 + $0x8] sm:$0xff]
        %v284 = vld [vmem:[%s281 + $0x30] sm:$0xff]
        %v285 = vld [vmem:[%s281 + $0x38] sm:$0xff]
        %v286 = vadd.f32 %v256, %v277
        %v287 = vadd.f32 %v257, %v278
        %v288 = vadd.f32 %v258, %v279
        %v289 = vadd.f32 %v259, %v280
        %v290 = vadd.f32 %v260, %v282
        %v291 = vadd.f32 %v261, %v283
        %v292 = vadd.f32 %v262, %v284
        %v293 = vadd.f32 %v263, %v285
        %v294 = vmul.f32 %v277, %v277
        %v295 = vmul.f32 %v278, %v278
        %v296 = vmul.f32 %v279, %v279
        %v297 = vmul.f32 %v280, %v280
        %v298 = vadd.f32 %v264, %v294
        %v299 = vadd.f32 %v265, %v295
        %v300 = vadd.f32 %v266, %v296
        %v301 = vadd.f32 %v267, %v297
        %v302 = vmul.f32 %v282, %v282
        %v303 = vmul.f32 %v283, %v283
        %v304 = vmul.f32 %v284, %v284
        %v305 = vmul.f32 %v285, %v285
        %v306 = vadd.f32 %v268, %v302
        %v307 = vadd.f32 %v269, %v303
        %v308 = vadd.f32 %v270, %v304
        %v309 = vadd.f32 %v271, %v305
        %v310 = vmul.f32 %v277, %v282
        %v311 = vmul.f32 %v278, %v283
        %v312 = vmul.f32 %v279, %v284
        %v313 = vmul.f32 %v280, %v285
        %v314 = vadd.f32 %v272, %v310
        %v315 = vadd.f32 %v273, %v311
        %v316 = vadd.f32 %v274, %v312
        %v317 = vadd.f32 %v275, %v313
        %s318 = scalar_lea.vmem %s228, 32 [#allocation5]
        %v319 = vld [vmem:[%s318] sm:$0xff]
        %v320 = vld [vmem:[%s318 + $0x8] sm:$0xff]
        %v321 = vld [vmem:[%s318 + $0x30] sm:$0xff]
        %v322 = vld [vmem:[%s318 + $0x38] sm:$0xff]
        %s323 = scalar_lea.vmem %s219, 32 [#allocation2]
        %v324 = vld [vmem:[%s323] sm:$0xff]
        %v325 = vld [vmem:[%s323 + $0x8] sm:$0xff]
        %v326 = vld [vmem:[%s323 + $0x30] sm:$0xff]
        %v327 = vld [vmem:[%s323 + $0x38] sm:$0xff]
        %v328 = vadd.f32 %v286, %v319
        %v329 = vadd.f32 %v287, %v320
        %v330 = vadd.f32 %v288, %v321
        %v331 = vadd.f32 %v289, %v322
        %v332 = vadd.f32 %v290, %v324
        %v333 = vadd.f32 %v291, %v325
        %v334 = vadd.f32 %v292, %v326
        %v335 = vadd.f32 %v293, %v327
        %v336 = vmul.f32 %v319, %v319
        %v337 = vmul.f32 %v320, %v320
        %v338 = vmul.f32 %v321, %v321
        %v339 = vmul.f32 %v322, %v322
        %v340 = vadd.f32 %v298, %v336
        %v341 = vadd.f32 %v299, %v337
        %v342 = vadd.f32 %v300, %v338
        %v343 = vadd.f32 %v301, %v339
        %v344 = vmul.f32 %v324, %v324
        %v345 = vmul.f32 %v325, %v325
        %v346 = vmul.f32 %v326, %v326
        %v347 = vmul.f32 %v327, %v327
        %v348 = vadd.f32 %v306, %v344
        %v349 = vadd.f32 %v307, %v345
        %v350 = vadd.f32 %v308, %v346
        %v351 = vadd.f32 %v309, %v347
        %v352 = vmul.f32 %v319, %v324
        %v353 = vmul.f32 %v320, %v325
        %v354 = vmul.f32 %v321, %v326
        %v355 = vmul.f32 %v322, %v327
        %v356 = vadd.f32 %v314, %v352
        %v357 = vadd.f32 %v315, %v353
        %v358 = vadd.f32 %v316, %v354
        %v359 = vadd.f32 %v317, %v355
        %364 = vrot.lane.b32.xlu0 %v328, 1
        %v365 = vpop.permute.xlu0 %364
        %366 = vrot.lane.b32.xlu0 %v329, 1
        %v367 = vpop.permute.xlu0 %366
        %368 = vrot.lane.b32.xlu0 %v330, 1
        %v369 = vpop.permute.xlu0 %368
        %370 = vrot.lane.b32.xlu0 %v331, 1
        %v371 = vpop.permute.xlu0 %370
        %vm376 = vcmask 7168
        %v377 = vsel %vm376, 0.0, %v365
        %v378 = vsel %vm376, 0.0, %v367
        %v379 = vsel %vm376, 0.0, %v369
        %v380 = vsel %vm376, 0.0, %v371
        %v381 = vadd.f32 %v328, %v377
        %v382 = vadd.f32 %v329, %v378
        %v383 = vadd.f32 %v330, %v379
        %v384 = vadd.f32 %v331, %v380
        %385 = vrot.lane.b32.xlu0 %v328, 127
        %v386 = vpop.permute.xlu0 %385
        %387 = vrot.lane.b32.xlu0 %v329, 127
        %v388 = vpop.permute.xlu0 %387
        %389 = vrot.lane.b32.xlu0 %v330, 127
        %v390 = vpop.permute.xlu0 %389
        %391 = vrot.lane.b32.xlu0 %v331, 127
        %v392 = vpop.permute.xlu0 %391
        %vm397 = vcmask 121856
        %v398 = vsel %vm397, %v386, 0.0
        %v399 = vsel %vm397, %v388, 0.0
        %v400 = vsel %vm397, %v390, 0.0
        %v401 = vsel %vm397, %v392, 0.0
        %v402 = vadd.f32 %v381, %v398
        %v403 = vadd.f32 %v382, %v399
        %v404 = vadd.f32 %v383, %v400
        %v405 = vadd.f32 %v384, %v401
        %vm410 = vcmask 1040384
        %v411 = vrot.slane %v402, 7
        %v412 = vrot.slane %v403, 7
        %v413 = vsel %vm410, %v411, %v412
        %v414 = vrot.slane %v404, 7
        %v415 = vrot.slane %v405, 7
        %v416 = vsel %vm410, %v414, %v415
        %v421 = vsel %vm410, 0.0, %v411
        %v422 = vsel %vm410, 0.0, %v414
        %v423 = vadd.f32 %v402, %v421
        %v424 = vadd.f32 %v403, %v413
        %v425 = vadd.f32 %v404, %v422
        %v426 = vadd.f32 %v405, %v416
        %vm427 = vcmask 1046528
        %v428 = vrot.slane %v402, 1
        %v429 = vrot.slane %v403, 1
        %v430 = vsel %vm427, %v428, %v429
        %v431 = vrot.slane %v404, 1
        %v432 = vrot.slane %v405, 1
        %v433 = vsel %vm427, %v431, %v432
        %v438 = vsel %vm427, %v429, 0.0
        %v439 = vsel %vm427, %v432, 0.0
        %v440 = vadd.f32 %v423, %v430
        %v441 = vadd.f32 %v424, %v438
        %v442 = vadd.f32 %v425, %v433
        %v443 = vadd.f32 %v426, %v439
        %448 = vrot.lane.b32.xlu0 %v332, 1
        %v449 = vpop.permute.xlu0 %448
        %450 = vrot.lane.b32.xlu0 %v333, 1
        %v451 = vpop.permute.xlu0 %450
        %452 = vrot.lane.b32.xlu0 %v334, 1
        %v453 = vpop.permute.xlu0 %452
        %454 = vrot.lane.b32.xlu0 %v335, 1
        %v455 = vpop.permute.xlu0 %454
        %v460 = vsel %vm376, 0.0, %v449
        %v461 = vsel %vm376, 0.0, %v451
        %v462 = vsel %vm376, 0.0, %v453
        %v463 = vsel %vm376, 0.0, %v455
        %v464 = vadd.f32 %v332, %v460
        %v465 = vadd.f32 %v333, %v461
        %v466 = vadd.f32 %v334, %v462
        %v467 = vadd.f32 %v335, %v463
        %468 = vrot.lane.b32.xlu0 %v332, 127
        %v469 = vpop.permute.xlu0 %468
        %470 = vrot.lane.b32.xlu0 %v333, 127
        %v471 = vpop.permute.xlu0 %470
        %472 = vrot.lane.b32.xlu0 %v334, 127
        %v473 = vpop.permute.xlu0 %472
        %474 = vrot.lane.b32.xlu0 %v335, 127
        %v475 = vpop.permute.xlu0 %474
        %v480 = vsel %vm397, %v469, 0.0
        %v481 = vsel %vm397, %v471, 0.0
        %v482 = vsel %vm397, %v473, 0.0
        %v483 = vsel %vm397, %v475, 0.0
        %v484 = vadd.f32 %v464, %v480
        %v485 = vadd.f32 %v465, %v481
        %v486 = vadd.f32 %v466, %v482
        %v487 = vadd.f32 %v467, %v483
        %v492 = vrot.slane %v484, 7
        %v493 = vrot.slane %v485, 7
        %v494 = vsel %vm410, %v492, %v493
        %v495 = vrot.slane %v486, 7
        %v496 = vrot.slane %v487, 7
        %v497 = vsel %vm410, %v495, %v496
        %v502 = vsel %vm410, 0.0, %v492
        %v503 = vsel %vm410, 0.0, %v495
        %v504 = vadd.f32 %v484, %v502
        %v505 = vadd.f32 %v485, %v494
        %v506 = vadd.f32 %v486, %v503
        %v507 = vadd.f32 %v487, %v497
        %v508 = vrot.slane %v484, 1
        %v509 = vrot.slane %v485, 1
        %v510 = vsel %vm427, %v508, %v509
        %v511 = vrot.slane %v486, 1
        %v512 = vrot.slane %v487, 1
        %v513 = vsel %vm427, %v511, %v512
        %v518 = vsel %vm427, %v509, 0.0
        %v519 = vsel %vm427, %v512, 0.0
        %v520 = vadd.f32 %v504, %v510
        %v521 = vadd.f32 %v505, %v518
        %v522 = vadd.f32 %v506, %v513
        %v523 = vadd.f32 %v507, %v519
        %528 = vrot.lane.b32.xlu0 %v340, 1
        %v529 = vpop.permute.xlu0 %528
        %530 = vrot.lane.b32.xlu0 %v341, 1
        %v531 = vpop.permute.xlu0 %530
        %532 = vrot.lane.b32.xlu0 %v342, 1
        %v533 = vpop.permute.xlu0 %532
        %534 = vrot.lane.b32.xlu0 %v343, 1
        %v535 = vpop.permute.xlu0 %534
        %v540 = vsel %vm376, 0.0, %v529
        %v541 = vsel %vm376, 0.0, %v531
        %v542 = vsel %vm376, 0.0, %v533
        %v543 = vsel %vm376, 0.0, %v535
        %v544 = vadd.f32 %v340, %v540
        %v545 = vadd.f32 %v341, %v541
        %v546 = vadd.f32 %v342, %v542
        %v547 = vadd.f32 %v343, %v543
        %548 = vrot.lane.b32.xlu0 %v340, 127
        %v549 = vpop.permute.xlu0 %548
        %550 = vrot.lane.b32.xlu0 %v341, 127
        %v551 = vpop.permute.xlu0 %550
        %552 = vrot.lane.b32.xlu0 %v342, 127
        %v553 = vpop.permute.xlu0 %552
        %554 = vrot.lane.b32.xlu0 %v343, 127
        %v555 = vpop.permute.xlu0 %554
        %v560 = vsel %vm397, %v549, 0.0
        %v561 = vsel %vm397, %v551, 0.0
        %v562 = vsel %vm397, %v553, 0.0
        %v563 = vsel %vm397, %v555, 0.0
        %v564 = vadd.f32 %v544, %v560
        %v565 = vadd.f32 %v545, %v561
        %v566 = vadd.f32 %v546, %v562
        %v567 = vadd.f32 %v547, %v563
        %v572 = vrot.slane %v564, 7
        %v573 = vrot.slane %v565, 7
        %v574 = vsel %vm410, %v572, %v573
        %v575 = vrot.slane %v566, 7
        %v576 = vrot.slane %v567, 7
        %v577 = vsel %vm410, %v575, %v576
        %v582 = vsel %vm410, 0.0, %v572
        %v583 = vsel %vm410, 0.0, %v575
        %v584 = vadd.f32 %v564, %v582
        %v585 = vadd.f32 %v565, %v574
        %v586 = vadd.f32 %v566, %v583
        %v587 = vadd.f32 %v567, %v577
        %v588 = vrot.slane %v564, 1
        %v589 = vrot.slane %v565, 1
        %v590 = vsel %vm427, %v588, %v589
        %v591 = vrot.slane %v566, 1
        %v592 = vrot.slane %v567, 1
        %v593 = vsel %vm427, %v591, %v592
        %v598 = vsel %vm427, %v589, 0.0
        %v599 = vsel %vm427, %v592, 0.0
        %v600 = vadd.f32 %v584, %v590
        %v601 = vadd.f32 %v585, %v598
        %v602 = vadd.f32 %v586, %v593
        %v603 = vadd.f32 %v587, %v599
        %608 = vrot.lane.b32.xlu0 %v348, 1
        %v609 = vpop.permute.xlu0 %608
        %610 = vrot.lane.b32.xlu0 %v349, 1
        %v611 = vpop.permute.xlu0 %610
        %612 = vrot.lane.b32.xlu0 %v350, 1
        %v613 = vpop.permute.xlu0 %612
        %614 = vrot.lane.b32.xlu0 %v351, 1
        %v615 = vpop.permute.xlu0 %614
        %v620 = vsel %vm376, 0.0, %v609
        %v621 = vsel %vm376, 0.0, %v611
        %v622 = vsel %vm376, 0.0, %v613
        %v623 = vsel %vm376, 0.0, %v615
        %v624 = vadd.f32 %v348, %v620
        %v625 = vadd.f32 %v349, %v621
        %v626 = vadd.f32 %v350, %v622
        %v627 = vadd.f32 %v351, %v623
        %628 = vrot.lane.b32.xlu0 %v348, 127
        %v629 = vpop.permute.xlu0 %628
        %630 = vrot.lane.b32.xlu0 %v349, 127
        %v631 = vpop.permute.xlu0 %630
        %632 = vrot.lane.b32.xlu0 %v350, 127
        %v633 = vpop.permute.xlu0 %632
        %634 = vrot.lane.b32.xlu0 %v351, 127
        %v635 = vpop.permute.xlu0 %634
        %v640 = vsel %vm397, %v629, 0.0
        %v641 = vsel %vm397, %v631, 0.0
        %v642 = vsel %vm397, %v633, 0.0
        %v643 = vsel %vm397, %v635, 0.0
        %v644 = vadd.f32 %v624, %v640
        %v645 = vadd.f32 %v625, %v641
        %v646 = vadd.f32 %v626, %v642
        %v647 = vadd.f32 %v627, %v643
        %v652 = vrot.slane %v644, 7
        %v653 = vrot.slane %v645, 7
        %v654 = vsel %vm410, %v652, %v653
        %v655 = vrot.slane %v646, 7
        %v656 = vrot.slane %v647, 7
        %v657 = vsel %vm410, %v655, %v656
        %v662 = vsel %vm410, 0.0, %v652
        %v663 = vsel %vm410, 0.0, %v655
        %v664 = vadd.f32 %v644, %v662
        %v665 = vadd.f32 %v645, %v654
        %v666 = vadd.f32 %v646, %v663
        %v667 = vadd.f32 %v647, %v657
        %v668 = vrot.slane %v644, 1
        %v669 = vrot.slane %v645, 1
        %v670 = vsel %vm427, %v668, %v669
        %v671 = vrot.slane %v646, 1
        %v672 = vrot.slane %v647, 1
        %v673 = vsel %vm427, %v671, %v672
        %v678 = vsel %vm427, %v669, 0.0
        %v679 = vsel %vm427, %v672, 0.0
        %v680 = vadd.f32 %v664, %v670
        %v681 = vadd.f32 %v665, %v678
        %v682 = vadd.f32 %v666, %v673
        %v683 = vadd.f32 %v667, %v679
        %688 = vrot.lane.b32.xlu0 %v356, 1
        %v689 = vpop.permute.xlu0 %688
        %690 = vrot.lane.b32.xlu0 %v357, 1
        %v691 = vpop.permute.xlu0 %690
        %692 = vrot.lane.b32.xlu0 %v358, 1
        %v693 = vpop.permute.xlu0 %692
        %694 = vrot.lane.b32.xlu0 %v359, 1
        %v695 = vpop.permute.xlu0 %694
        %v700 = vsel %vm376, 0.0, %v689
        %v701 = vsel %vm376, 0.0, %v691
        %v702 = vsel %vm376, 0.0, %v693
        %v703 = vsel %vm376, 0.0, %v695
        %v704 = vadd.f32 %v356, %v700
        %v705 = vadd.f32 %v357, %v701
        %v706 = vadd.f32 %v358, %v702
        %v707 = vadd.f32 %v359, %v703
        %708 = vrot.lane.b32.xlu0 %v356, 127
        %v709 = vpop.permute.xlu0 %708
        %710 = vrot.lane.b32.xlu0 %v357, 127
        %v711 = vpop.permute.xlu0 %710
        %712 = vrot.lane.b32.xlu0 %v358, 127
        %v713 = vpop.permute.xlu0 %712
        %714 = vrot.lane.b32.xlu0 %v359, 127
        %v715 = vpop.permute.xlu0 %714
        %v720 = vsel %vm397, %v709, 0.0
        %v721 = vsel %vm397, %v711, 0.0
        %v722 = vsel %vm397, %v713, 0.0
        %v723 = vsel %vm397, %v715, 0.0
        %v724 = vadd.f32 %v704, %v720
        %v725 = vadd.f32 %v705, %v721
        %v726 = vadd.f32 %v706, %v722
        %v727 = vadd.f32 %v707, %v723
        %v732 = vrot.slane %v724, 7
        %v733 = vrot.slane %v725, 7
        %v734 = vsel %vm410, %v732, %v733
        %v735 = vrot.slane %v726, 7
        %v736 = vrot.slane %v727, 7
        %v737 = vsel %vm410, %v735, %v736
        %v742 = vsel %vm410, 0.0, %v732
        %v743 = vsel %vm410, 0.0, %v735
        %v744 = vadd.f32 %v724, %v742
        %v745 = vadd.f32 %v725, %v734
        %v746 = vadd.f32 %v726, %v743
        %v747 = vadd.f32 %v727, %v737
        %v748 = vrot.slane %v724, 1
        %v749 = vrot.slane %v725, 1
        %v750 = vsel %vm427, %v748, %v749
        %v751 = vrot.slane %v726, 1
        %v752 = vrot.slane %v727, 1
        %v753 = vsel %vm427, %v751, %v752
        %v758 = vsel %vm427, %v749, 0.0
        %v759 = vsel %vm427, %v752, 0.0
        %v760 = vadd.f32 %v744, %v750
        %v761 = vadd.f32 %v745, %v758
        %v762 = vadd.f32 %v746, %v753
        %v763 = vadd.f32 %v747, %v759
        %v764 = vmul.f32 %v440, 0.037037037
        %v765 = vmul.f32 %v441, 0.037037037
        %v766 = vmul.f32 %v442, 0.037037037
        %v767 = vmul.f32 %v443, 0.037037037
        %v768 = vmul.f32 %v520, 0.037037037
        %v769 = vmul.f32 %v521, 0.037037037
        %v770 = vmul.f32 %v522, 0.037037037
        %v771 = vmul.f32 %v523, 0.037037037
        %v772 = vmul.f32 %v764, 27.0
        %v773 = vmul.f32 %v765, 27.0
        %v774 = vmul.f32 %v766, 27.0
        %v775 = vmul.f32 %v767, 27.0
        %v776 = vmul.f32 %v772, %v764
        %v777 = vmul.f32 %v773, %v765
        %v778 = vmul.f32 %v774, %v766
        %v779 = vmul.f32 %v775, %v767
        %v780 = vsub.f32 %v600, %v776
        %v781 = vsub.f32 %v601, %v777
        %v782 = vsub.f32 %v602, %v778
        %v783 = vsub.f32 %v603, %v779
        %v784 = vmul.f32 %v780, 0.03846154
        %v785 = vmul.f32 %v781, 0.03846154
        %v786 = vmul.f32 %v782, 0.03846154
        %v787 = vmul.f32 %v783, 0.03846154
        %v788 = vmul.f32 %v768, 27.0
        %v789 = vmul.f32 %v769, 27.0
        %v790 = vmul.f32 %v770, 27.0
        %v791 = vmul.f32 %v771, 27.0
        %v792 = vmul.f32 %v788, %v768
        %v793 = vmul.f32 %v789, %v769
        %v794 = vmul.f32 %v790, %v770
        %v795 = vmul.f32 %v791, %v771
        %v796 = vsub.f32 %v680, %v792
        %v797 = vsub.f32 %v681, %v793
        %v798 = vsub.f32 %v682, %v794
        %v799 = vsub.f32 %v683, %v795
        %v800 = vmul.f32 %v796, 0.03846154
        %v801 = vmul.f32 %v797, 0.03846154
        %v802 = vmul.f32 %v798, 0.03846154
        %v803 = vmul.f32 %v799, 0.03846154
        %v804 = vmul.f32 %v760, 0.037037037
        %v805 = vmul.f32 %v761, 0.037037037
        %v806 = vmul.f32 %v762, 0.037037037
        %v807 = vmul.f32 %v763, 0.037037037
        %v808 = vmul.f32 %v764, %v768
        %v809 = vmul.f32 %v765, %v769
        %v810 = vmul.f32 %v766, %v770
        %v811 = vmul.f32 %v767, %v771
        %v812 = vsub.f32 %v804, %v808
        %v813 = vsub.f32 %v805, %v809
        %v814 = vsub.f32 %v806, %v810
        %v815 = vsub.f32 %v807, %v811
        %v816 = vmul.f32 %v764, 2.0
        %v817 = vmul.f32 %v765, 2.0
        %v818 = vmul.f32 %v766, 2.0
        %v819 = vmul.f32 %v767, 2.0
        %v820 = vmul.f32 %v816, %v768
        %v821 = vmul.f32 %v817, %v769
        %v822 = vmul.f32 %v818, %v770
        %v823 = vmul.f32 %v819, %v771
        %v824 = vadd.f32 %v820, 0.0001
        %v825 = vadd.f32 %v821, 0.0001
        %v826 = vadd.f32 %v822, 0.0001
        %v827 = vadd.f32 %v823, 0.0001
        %v828 = vmul.f32 %v812, 2.0
        %v829 = vmul.f32 %v813, 2.0
        %v830 = vmul.f32 %v814, 2.0
        %v831 = vmul.f32 %v815, 2.0
        %v832 = vadd.f32 %v828, 0.0009
        %v833 = vadd.f32 %v829, 0.0009
        %v834 = vadd.f32 %v830, 0.0009
        %v835 = vadd.f32 %v831, 0.0009
        %v836 = vmul.f32 %v824, %v832
        %v837 = vmul.f32 %v825, %v833
        %v838 = vmul.f32 %v826, %v834
        %v839 = vmul.f32 %v827, %v835
        %v840 = vmul.f32 %v764, %v764
        %v841 = vmul.f32 %v765, %v765
        %v842 = vmul.f32 %v766, %v766
        %v843 = vmul.f32 %v767, %v767
        %v844 = vmul.f32 %v768, %v768
        %v845 = vmul.f32 %v769, %v769
        %v846 = vmul.f32 %v770, %v770
        %v847 = vmul.f32 %v771, %v771
        %v848 = vadd.f32 %v840, %v844
        %v849 = vadd.f32 %v841, %v845
        %v850 = vadd.f32 %v842, %v846
        %v851 = vadd.f32 %v843, %v847
        %v852 = vadd.f32 %v848, 0.0001
        %v853 = vadd.f32 %v849, 0.0001
        %v854 = vadd.f32 %v850, 0.0001
        %v855 = vadd.f32 %v851, 0.0001
        %v856 = vadd.f32 %v800, %v784
        %v857 = vadd.f32 %v801, %v785
        %v858 = vadd.f32 %v802, %v786
        %v859 = vadd.f32 %v803, %v787
        %v860 = vadd.f32 %v856, 0.0009
        %v861 = vadd.f32 %v857, 0.0009
        %v862 = vadd.f32 %v858, 0.0009
        %v863 = vadd.f32 %v859, 0.0009
        %v864 = vmul.f32 %v852, %v860
        %v865 = vmul.f32 %v853, %v861
        %v866 = vmul.f32 %v854, %v862
        %v867 = vmul.f32 %v855, %v863
        %v868 = vrcp.pop %v864
        %v869 = vrcp.pop %v865
        %v870 = vrcp.pop %v866
        %v871 = vrcp.pop %v867
        %v872 = vmul.f32 %v836, %v868
        %v873 = vmul.f32 %v837, %v869
        %v874 = vmul.f32 %v838, %v870
        %v875 = vmul.f32 %v839, %v871
        %v876 = vsub.f32 1.0, %v872
        %v877 = vsub.f32 1.0, %v873
        %v878 = vsub.f32 1.0, %v874
        %v879 = vsub.f32 1.0, %v875
        %v880 = vmul.f32 %v876, 0.5
        %v881 = vmul.f32 %v877, 0.5
        %v882 = vmul.f32 %v878, 0.5
        %v883 = vmul.f32 %v879, 0.5
        %vm884 = vcmask 130048
        %v885 = vsel %vm884, %v880, 0.0
        %v886 = vsel %vm884, %v881, 0.0
        %v887 = vadd.f32 %v885, %v886
        %v888 = vsel %vm884, %v882, 0.0
        %v889 = vadd.f32 %v887, %v888
        %v890 = vsel %vm884, %v883, 0.0
        %v891 = vadd.f32 %v889, %v890
        %v892 = vrot.slane %v891, 4
        %v893 = vadd.f32 %v891, %v892
        %v894 = vrot.slane %v893, 2
        %v895 = vadd.f32 %v893, %v894
        %v896 = vrot.slane %v895, 1
        %v897 = vadd.f32 %v895, %v896
        %v898 = vsel %vm884, %v897, 0.0
        %899 = vadd.xlane.f32.xlu0 %v898
        %v900 = vpop.xlane.xlu0 %899
        %s901 = vtos %v900
        %v902 = vstv %s901
        %903 = vst [vmem:[%s253] sm:$0xff] %v902
        %s904 = sand.u32 %s82, 1
        %s905 = scalar_lea.sflag [#allocation4], %s904
        %s906 = sand.u32 %s82, 1
        %s907 = smul.addr %s906, 8
        %s908 = scalar_lea.vmem [#allocation7], %s907
        // Predicated region
        $region37: #{tpu_custom_call.1} parent=27 // pred_check
          %p909 = pneg %p92
        $region38: #{tpu_custom_call.1} parent=27 // pred_check_branch
          %911 = sbr.rel (%p909) target = $region40
        $region39: #{tpu_custom_call.1} parent=27 // pred_region
          %s913 = ssub.s32 128, 128
          %914 = vsyncadd %s905, %s913
          %s915 = smul.addr %s22, 128
          %s916 = scalar_lea.hbm %s2, %s915
          %s918 = sshll.u32 %s908, 4
          %s919 = int_to_ptr.vmem [resolvable:$true] %s918
          %921 = dma.vmem_to_hbm [thread:$0]  %s919, 128, %s916, %s905
        $region40: #{tpu_custom_call.1} parent=27 // pred_fallthru
          _
      $region28: #{tpu_custom_call.1} parent=5 // pred_fallthru
        _
      %p922 = scmp.le.s32.totalorder 2, %s17
      // Predicated region
      $region41: #{tpu_custom_call.1} parent=5 // pred_check
        %p923 = pneg %p922
      $region42: #{tpu_custom_call.1} parent=5 // pred_check_branch
        %925 = sbr.rel (%p923) target = $region44
      $region43: #{tpu_custom_call.1} parent=5 // pred_region
        %s926 = ssub.s32 %s17, 2
        // Predicated region
        $region45: #{tpu_custom_call.1} parent=43 // pred_check
          %p927 = pneg %p98
        $region46: #{tpu_custom_call.1} parent=43 // pred_check_branch
          %929 = sbr.rel (%p927) target = $region48
        $region47: #{tpu_custom_call.1} parent=43 // pred_region
          %s930 = sand.u32 %s83, 1
          %s931 = scalar_lea.sflag [#allocation4], %s930
          %s932 = sand.u32 %s83, 1
          %s933 = smul.addr %s932, 8
          %s934 = scalar_lea.vmem [#allocation7], %s933
          %935 = dma.done %s931, 128
        $region48: #{tpu_custom_call.1} parent=43 // pred_fallthru
          _
      $region44: #{tpu_custom_call.1} parent=5 // pred_fallthru
        _
    $region6: #{tpu_custom_call.1} parent=1 // loop_footer
      %s21 = sadd.s32 1, %s17
    $region7: #{tpu_custom_call.1} parent=1 // loop_footer_branch
      %16 = sbr.rel target = $region3
    $region8: #{tpu_custom_call.1} parent=1 // loop_exit
      _
    %936 = vsyncpa [#allocation3], 1
    %s937 = scalar_lea.sflag [#allocation3], 1
    %938 = vsyncpa %s937, 1
    %939 = vsyncpa [#allocation6], 1
    %s940 = scalar_lea.sflag [#allocation6], 1
    %941 = vsyncpa %s940, 1
    %942 = vsyncpa [#allocation4], 1
    %s943 = scalar_lea.sflag [#allocation4], 1
    %944 = vsyncpa %s943, 1

</llo_original>
